<compile_context>
chip_gen: v7x
topology: tpu7x:2x2x1
jax: 0.10.0
libtpu: 0.0.40
codegen_flags: <defaults>
</compile_context>

<pallas_src>
import functools

import jax
import jax.numpy as jnp
import numpy as np
from jax.experimental import pallas as pl
from jax.experimental.pallas import tpu as pltpu


# --------------------------------------------------------------------------
# Pallas kernel: attention + weighted context + 1-step multi-layer GRU + FC
# --------------------------------------------------------------------------
def _decoder_kernel(n_layers, n_hidden_dec, *refs):
    L, Hd = n_layers, n_hidden_dec
    f32 = jnp.float32

    it = iter(refs)
    emb_ref, hdec_ref, enc_ref = next(it), next(it), next(it)
    Wah_ref, Wae_ref, ba_ref, v_ref = next(it), next(it), next(it), next(it)
    layer_refs = []
    for l in range(L):
        n_refs = 5 if l == 0 else 4          # layer 0: Wih split into (emb, weighted)
        layer_refs.append(tuple(next(it) for _ in range(n_refs)))
    Wfce_ref, Wfcw_ref, Wfch_ref, bfc_ref = next(it), next(it), next(it), next(it)
    out_ref, hout_ref, att_ref = next(it), next(it), next(it)

    emb = emb_ref[...]                       # [bb, E]
    enc = enc_ref[...]                       # [bb, S, He2]
    bb, S, He2 = enc.shape

    # ----- Bahdanau attention, batched over (bb, S) -------------------------
    h_top = hdec_ref[L - 1]                  # [bb, Hd]  leading-axis load
    e_enc = jnp.dot(enc.reshape(bb * S, He2), Wae_ref[...],
                    preferred_element_type=f32).reshape(bb, S, Hd)
    e_h = jnp.dot(h_top, Wah_ref[...], preferred_element_type=f32)      # [bb, Hd]
    energy = jnp.tanh(e_enc + e_h[:, None, :] + ba_ref[...])            # [bb, S, Hd]

    # score = energy . v  ->  VPU multiply + lane reduce (no N=1 MXU matmul)
    score = jnp.sum(energy * v_ref[...], axis=-1)                       # [bb, S]
    score = score - jnp.max(score, axis=-1, keepdims=True)              # lane reduce
    exp_s = jnp.exp(score)
    att = exp_s * pl.reciprocal(jnp.sum(exp_s, axis=-1, keepdims=True),
                                approx=True)                            # [bb, S]
    att_ref[...] = att                                                  # lane-dense store

    # weighted context: sum_s att[b, s] * enc[b, s, :]
    weighted = jnp.sum(att[:, :, None] * enc, axis=1)                   # [bb, He2]

    # ----- single timestep, multi-layer GRU ---------------------------------
    # gi / gh stay as separate dots so the gates remain separable; layer-0's
    # [emb ; weighted] concat is replaced by split-weight partial sums.
    x = None
    for l in range(L):
        h_prev = hdec_ref[l]                                            # [bb, Hd]
        if l == 0:
            Wih_e, Wih_w, Whh, bih, bhh = layer_refs[l]
            gi = (jnp.dot(emb, Wih_e[...], preferred_element_type=f32)
                  + jnp.dot(weighted, Wih_w[...], preferred_element_type=f32)
                  + bih[...])
        else:
            Wih, Whh, bih, bhh = layer_refs[l]
            gi = jnp.dot(x, Wih[...], preferred_element_type=f32) + bih[...]
        gh = jnp.dot(h_prev, Whh[...], preferred_element_type=f32) + bhh[...]
        r_g = jax.nn.sigmoid(gi[:, :Hd] + gh[:, :Hd])
        z_g = jax.nn.sigmoid(gi[:, Hd:2 * Hd] + gh[:, Hd:2 * Hd])
        n_g = jnp.tanh(gi[:, 2 * Hd:] + r_g * gh[:, 2 * Hd:])
        h_new = (1.0 - z_g) * n_g + z_g * h_prev
        hout_ref[l] = h_new                                             # leading-axis store
        x = h_new
        # TODO(synk): inter-layer GRU dropout / nn.Dropout are eval-mode identity here.

    # ----- final linear projection: fc_in concat replaced by split weights --
    out_ref[...] = (jnp.dot(emb, Wfce_ref[...], preferred_element_type=f32)
                    + jnp.dot(weighted, Wfcw_ref[...], preferred_element_type=f32)
                    + jnp.dot(x, Wfch_ref[...], preferred_element_type=f32)
                    + bfc_ref[...])


def _const_index_map(ndim):
    return lambda i: (0,) * ndim


# --------------------------------------------------------------------------
# Wrapper (glue): embedding gather, weight splits, pallas_call, output reshape
# --------------------------------------------------------------------------
def decoder_forward(params, target, hidden_dec, last_layer_enc, *, batch_block=None):
    b, L, Hd = hidden_dec.shape
    _, S, He2 = last_layer_enc.shape
    E = params['embedding'].shape[1]
    n_output = params['Wfc'].shape[1]

    # Batch grid (sharded across TensorCores on v7x for large decode batches).
    bb = b if batch_block is None else batch_block
    assert bb == b or (bb % 8 == 0 and b % bb == 0), \
        "batch_block must be the full batch or a multiple of 8 dividing b"
    grid = (pl.cdiv(b, bb),)

    # --- glue: embedding gather, layer-major hidden, trace-time weight splits
    emb = params['embedding'][target]                      # [b, E]
    hdec_t = jnp.transpose(hidden_dec, (1, 0, 2))          # [L, b, Hd]

    Wa = params['Wa']
    Wa_h, Wa_enc = Wa[:Hd], Wa[Hd:]                        # kills [h ; enc] concat
    v_row = jnp.reshape(params['v'], (1, Hd))              # lane-broadcast form

    Wfc = params['Wfc']
    Wfc_e, Wfc_w, Wfc_h = Wfc[:E], Wfc[E:E + He2], Wfc[E + He2:]

    inputs, in_specs = [], []

    def add(x, spec=None):
        inputs.append(x)
        in_specs.append(spec if spec is not None
                        else pl.BlockSpec(x.shape, _const_index_map(x.ndim)))

    add(emb, pl.BlockSpec((bb, E), lambda i: (i, 0)))
    add(hdec_t, pl.BlockSpec((L, bb, Hd), lambda i: (0, i, 0)))
    add(last_layer_enc, pl.BlockSpec((bb, S, He2), lambda i: (i, 0, 0)))
    for w in (Wa_h, Wa_enc, params['ba'], v_row):
        add(w)
    for l, g in enumerate(params['gru']):
        if l == 0:
            Wih = g['Wih']
            for w in (Wih[:E], Wih[E:], g['Whh'], g['bih'], g['bhh']):
                add(w)
        else:
            for w in (g['Wih'], g['Whh'], g['bih'], g['bhh']):
                add(w)
    for w in (Wfc_e, Wfc_w, Wfc_h, params['bfc']):
        add(w)

    out_shape = (
        jax.ShapeDtypeStruct((b, n_output), jnp.float32),  # output logits
        jax.ShapeDtypeStruct((L, b, Hd), jnp.float32),     # last_h_dec (layer-major)
        jax.ShapeDtypeStruct((b, S), jnp.float32),         # att (lane-dense)
    )
    out_specs = (
        pl.BlockSpec((bb, n_output), lambda i: (i, 0)),
        pl.BlockSpec((L, bb, Hd), lambda i: (0, i, 0)),
        pl.BlockSpec((bb, S), lambda i: (i, 0)),
    )

    out, h_out_t, att = pl.pallas_call(
        functools.partial(_decoder_kernel, L, Hd),
        out_shape=out_shape,
        grid=grid,
        in_specs=in_specs,
        out_specs=out_specs,
        compiler_params=pltpu.CompilerParams(
            dimension_semantics=("parallel",)),
    )(*inputs)

    last_h_dec = jnp.transpose(h_out_t, (1, 0, 2))         # [b, L, Hd]   (glue)
    att_weights = att[:, None, :]                          # [b, 1, S]    (glue)
    return out, last_h_dec, att_weights


# --------------------------------------------------------------------------
# Deterministic parameter init (shapes from Decoder.__init__)
# --------------------------------------------------------------------------
def init_params(key, n_output, n_embed, n_hidden_enc, n_hidden_dec, n_layers):
    He2 = 2 * n_hidden_enc
    Hd = n_hidden_dec
    keys = iter(jax.random.split(key, 8 + 4 * n_layers))

    def w(shape, scale=0.1):
        return (scale * jax.random.normal(next(keys), shape)).astype(jnp.float32)

    p = {
        'embedding': w((n_output, n_embed)),
        'Wa': w((Hd + He2, Hd)),        # attention: Linear(Hd + He2 -> Hd)
        'ba': w((1, Hd)),
        'v': w((Hd, 1)),                # attention: Linear(Hd -> 1, no bias)
        'gru': [],
        'Wfc': w((n_embed + He2 + Hd, n_output)),
        'bfc': w((1, n_output)),
    }
    for l in range(n_layers):
        in_l = (n_embed + He2) if l == 0 else Hd
        p['gru'].append(dict(
            Wih=w((in_l, 3 * Hd)),      # gate order: r, z, n (PyTorch convention)
            Whh=w((Hd, 3 * Hd)),
            bih=w((1, 3 * Hd)),
            bhh=w((1, 3 * Hd)),
        ))
    return p


# --------------------------------------------------------------------------
# Pure-JAX reference (mirrors the PyTorch forward) for correctness check
# --------------------------------------------------------------------------
def decoder_reference(params, target, hidden_dec, enc):
    b, L, Hd = hidden_dec.shape
    _, S, He2 = enc.shape
    mm = lambda a, w_: jnp.dot(a, w_, precision=jax.lax.Precision.HIGHEST)

    emb = params['embedding'][target]
    h_top = hidden_dec[:, -1, :]
    h_rep = jnp.broadcast_to(h_top[:, None, :], (b, S, Hd))
    cat = jnp.concatenate([h_rep, enc], axis=-1)
    energy = jnp.tanh(mm(cat, params['Wa']) + params['ba'])
    scores = jnp.squeeze(mm(energy, params['v']), -1)
    att = jax.nn.softmax(scores, axis=-1)                          # [b, S]
    weighted = jnp.einsum('bs,bsh->bh', att, enc,
                          precision=jax.lax.Precision.HIGHEST)

    x = jnp.concatenate([emb, weighted], axis=-1)
    new_h = []
    for l in range(L):
        g = params['gru'][l]
        h_prev = hidden_dec[:, l, :]
        gi = mm(x, g['Wih']) + g['bih']
        gh = mm(h_prev, g['Whh']) + g['bhh']
        r_g = jax.nn.sigmoid(gi[:, :Hd] + gh[:, :Hd])
        z_g = jax.nn.sigmoid(gi[:, Hd:2 * Hd] + gh[:, Hd:2 * Hd])
        n_g = jnp.tanh(gi[:, 2 * Hd:] + r_g * gh[:, 2 * Hd:])
        h = (1.0 - z_g) * n_g + z_g * h_prev
        new_h.append(h)
        x = h
    h_out = jnp.stack(new_h, axis=1)
    fc_in = jnp.concatenate([emb, weighted, new_h[-1]], axis=-1)
    out = mm(fc_in, params['Wfc']) + params['bfc']
    return out, h_out, att[:, None, :]


if __name__ == "__main__":
    # small shapes consistent with the module's forward signature
    b, seq_len = 2, 8
    n_output, n_embed = 24, 16
    n_hidden_enc, n_hidden_dec = 32, 32
    n_layers = 2

    key = jax.random.PRNGKey(0)
    kp, k1, k2, k3 = jax.random.split(key, 4)
    params = init_params(kp, n_output, n_embed, n_hidden_enc, n_hidden_dec, n_layers)

    target = jax.random.randint(k1, (b,), 0, n_output)                         # [b]
    hidden_dec = jax.random.normal(k2, (b, n_layers, n_hidden_dec), jnp.float32)
    last_layer_enc = jax.random.normal(
        k3, (b, seq_len, 2 * n_hidden_enc), jnp.float32)

    out, last_h_dec, att_weights = decoder_forward(
        params, target, hidden_dec, last_layer_enc)
    jax.block_until_ready((out, last_h_dec, att_weights))

    ref_out, ref_h, ref_att = decoder_reference(
        params, target, hidden_dec, last_layer_enc)
    np.testing.assert_allclose(np.asarray(out), np.asarray(ref_out),
                               rtol=1e-3, atol=1e-3)
    np.testing.assert_allclose(np.asarray(last_h_dec), np.asarray(ref_h),
                               rtol=1e-3, atol=1e-3)
    np.testing.assert_allclose(np.asarray(att_weights), np.asarray(ref_att),
                               rtol=1e-3, atol=1e-3)

    print("KERNEL_OK")
</pallas_src>

<mosaic_0001>
module attributes {stable_mosaic.version = 11 : i64} {
  func.func @_decoder_kernel(%arg0: i32, %arg1: memref<2x16xf32, #tpu.memory_space<vmem>>, %arg2: memref<2x2x32xf32, #tpu.memory_space<vmem>>, %arg3: memref<2x8x64xf32, #tpu.memory_space<vmem>>, %arg4: memref<32x32xf32, #tpu.memory_space<vmem>>, %arg5: memref<64x32xf32, #tpu.memory_space<vmem>>, %arg6: memref<1x32xf32, #tpu.memory_space<vmem>>, %arg7: memref<1x32xf32, #tpu.memory_space<vmem>>, %arg8: memref<16x96xf32, #tpu.memory_space<vmem>>, %arg9: memref<64x96xf32, #tpu.memory_space<vmem>>, %arg10: memref<32x96xf32, #tpu.memory_space<vmem>>, %arg11: memref<1x96xf32, #tpu.memory_space<vmem>>, %arg12: memref<1x96xf32, #tpu.memory_space<vmem>>, %arg13: memref<32x96xf32, #tpu.memory_space<vmem>>, %arg14: memref<32x96xf32, #tpu.memory_space<vmem>>, %arg15: memref<1x96xf32, #tpu.memory_space<vmem>>, %arg16: memref<1x96xf32, #tpu.memory_space<vmem>>, %arg17: memref<16x24xf32, #tpu.memory_space<vmem>>, %arg18: memref<64x24xf32, #tpu.memory_space<vmem>>, %arg19: memref<32x24xf32, #tpu.memory_space<vmem>>, %arg20: memref<1x24xf32, #tpu.memory_space<vmem>>, %arg21: memref<2x24xf32, #tpu.memory_space<vmem>>, %arg22: memref<2x2x32xf32, #tpu.memory_space<vmem>>, %arg23: memref<2x8xf32, #tpu.memory_space<vmem>>) attributes {dimension_semantics = [#tpu.dimension_semantics<parallel>], iteration_bounds = array<i64: 1>, scalar_prefetch = 0 : i64, scratch_operands = 0 : i64, tpu.core_type = #tpu.core_type<tc>, window_params = [{transform_indices = @transform_0, window_bounds = array<i64: 2, 16>}, {transform_indices = @transform_1, window_bounds = array<i64: 2, 2, 32>}, {transform_indices = @transform_2, window_bounds = array<i64: 2, 8, 64>}, {pipeline_mode = #tpu.pipeline_mode<synchronous>, transform_indices = @transform_3, window_bounds = array<i64: 32, 32>}, {pipeline_mode = #tpu.pipeline_mode<synchronous>, transform_indices = @transform_4, window_bounds = array<i64: 64, 32>}, {pipeline_mode = #tpu.pipeline_mode<synchronous>, transform_indices = @transform_5, window_bounds = array<i64: 1, 32>}, {pipeline_mode = #tpu.pipeline_mode<synchronous>, transform_indices = @transform_6, window_bounds = array<i64: 1, 32>}, {pipeline_mode = #tpu.pipeline_mode<synchronous>, transform_indices = @transform_7, window_bounds = array<i64: 16, 96>}, {pipeline_mode = #tpu.pipeline_mode<synchronous>, transform_indices = @transform_8, window_bounds = array<i64: 64, 96>}, {pipeline_mode = #tpu.pipeline_mode<synchronous>, transform_indices = @transform_9, window_bounds = array<i64: 32, 96>}, {pipeline_mode = #tpu.pipeline_mode<synchronous>, transform_indices = @transform_10, window_bounds = array<i64: 1, 96>}, {pipeline_mode = #tpu.pipeline_mode<synchronous>, transform_indices = @transform_11, window_bounds = array<i64: 1, 96>}, {pipeline_mode = #tpu.pipeline_mode<synchronous>, transform_indices = @transform_12, window_bounds = array<i64: 32, 96>}, {pipeline_mode = #tpu.pipeline_mode<synchronous>, transform_indices = @transform_13, window_bounds = array<i64: 32, 96>}, {pipeline_mode = #tpu.pipeline_mode<synchronous>, transform_indices = @transform_14, window_bounds = array<i64: 1, 96>}, {pipeline_mode = #tpu.pipeline_mode<synchronous>, transform_indices = @transform_15, window_bounds = array<i64: 1, 96>}, {pipeline_mode = #tpu.pipeline_mode<synchronous>, transform_indices = @transform_16, window_bounds = array<i64: 16, 24>}, {pipeline_mode = #tpu.pipeline_mode<synchronous>, transform_indices = @transform_17, window_bounds = array<i64: 64, 24>}, {pipeline_mode = #tpu.pipeline_mode<synchronous>, transform_indices = @transform_18, window_bounds = array<i64: 32, 24>}, {pipeline_mode = #tpu.pipeline_mode<synchronous>, transform_indices = @transform_19, window_bounds = array<i64: 1, 24>}, {transform_indices = @transform_20, window_bounds = array<i64: 2, 24>}, {transform_indices = @transform_21, window_bounds = array<i64: 2, 2, 32>}, {transform_indices = @transform_22, window_bounds = array<i64: 2, 8>}]} {
    %c0 = arith.constant 0 : index
    %c0_0 = arith.constant 0 : index
    %0 = vector.load %arg1[%c0, %c0_0] : memref<2x16xf32, #tpu.memory_space<vmem>>, vector<2x16xf32>
    %c0_1 = arith.constant 0 : index
    %c0_2 = arith.constant 0 : index
    %c0_3 = arith.constant 0 : index
    %1 = vector.load %arg3[%c0_1, %c0_2, %c0_3] : memref<2x8x64xf32, #tpu.memory_space<vmem>>, vector<2x8x64xf32>
    %c1 = arith.constant 1 : index
    %c0_4 = arith.constant 0 : index
    %c0_5 = arith.constant 0 : index
    %2 = vector.load %arg2[%c1, %c0_4, %c0_5] : memref<2x2x32xf32, #tpu.memory_space<vmem>>, vector<1x2x32xf32>
    %3 = vector.shape_cast %2 : vector<1x2x32xf32> to vector<2x32xf32>
    %4 = vector.shape_cast %1 : vector<2x8x64xf32> to vector<16x64xf32>
    %c0_6 = arith.constant 0 : index
    %c0_7 = arith.constant 0 : index
    %5 = vector.load %arg5[%c0_6, %c0_7] : memref<64x32xf32, #tpu.memory_space<vmem>>, vector<64x32xf32>
    %cst = arith.constant dense<0.000000e+00> : vector<16x32xf32>
    %6 = tpu.matmul %4, %5, %cst {dimension_numbers = #tpu.dot_dimension_numbers<[1], [0], [0], [1], [0, 0, 1, 1], [], []>} : vector<16x64xf32>, vector<64x32xf32>, vector<16x32xf32> -> vector<16x32xf32>
    %7 = vector.shape_cast %6 : vector<16x32xf32> to vector<2x8x32xf32>
    %c0_8 = arith.constant 0 : index
    %c0_9 = arith.constant 0 : index
    %8 = vector.load %arg4[%c0_8, %c0_9] : memref<32x32xf32, #tpu.memory_space<vmem>>, vector<32x32xf32>
    %cst_10 = arith.constant dense<0.000000e+00> : vector<2x32xf32>
    %9 = tpu.matmul %3, %8, %cst_10 {dimension_numbers = #tpu.dot_dimension_numbers<[1], [0], [0], [1], [0, 0, 1, 1], [], []>} : vector<2x32xf32>, vector<32x32xf32>, vector<2x32xf32> -> vector<2x32xf32>
    %10 = vector.shape_cast %9 : vector<2x32xf32> to vector<2x1x32xf32>
    %11 = vector.broadcast %10 : vector<2x1x32xf32> to vector<2x8x32xf32>
    %12 = arith.addf %7, %11 : vector<2x8x32xf32>
    %c0_11 = arith.constant 0 : index
    %c0_12 = arith.constant 0 : index
    %13 = vector.load %arg6[%c0_11, %c0_12] : memref<1x32xf32, #tpu.memory_space<vmem>>, vector<1x32xf32>
    %14 = vector.shape_cast %13 : vector<1x32xf32> to vector<1x1x32xf32>
    %15 = vector.broadcast %14 : vector<1x1x32xf32> to vector<2x8x32xf32>
    %16 = arith.addf %12, %15 : vector<2x8x32xf32>
    %17 = math.tanh %16 : vector<2x8x32xf32>
    %c0_13 = arith.constant 0 : index
    %c0_14 = arith.constant 0 : index
    %18 = vector.load %arg7[%c0_13, %c0_14] : memref<1x32xf32, #tpu.memory_space<vmem>>, vector<1x32xf32>
    %19 = vector.shape_cast %18 : vector<1x32xf32> to vector<1x1x32xf32>
    %20 = vector.broadcast %19 : vector<1x1x32xf32> to vector<2x8x32xf32>
    %21 = arith.mulf %17, %20 : vector<2x8x32xf32>
    %cst_15 = arith.constant dense<0.000000e+00> : vector<2x8xf32>
    %22 = vector.multi_reduction <add>, %21, %cst_15 [2] : vector<2x8x32xf32> to vector<2x8xf32>
    %cst_16 = arith.constant dense<0xFF800000> : vector<2xf32>
    %23 = vector.multi_reduction <maximumf>, %22, %cst_16 [1] : vector<2x8xf32> to vector<2xf32>
    %24 = vector.shape_cast %23 : vector<2xf32> to vector<2x1xf32>
    %25 = vector.broadcast %24 : vector<2x1xf32> to vector<2x8xf32>
    %26 = arith.subf %22, %25 : vector<2x8xf32>
    %27 = math.exp %26 : vector<2x8xf32>
    %cst_17 = arith.constant dense<0.000000e+00> : vector<2xf32>
    %28 = vector.multi_reduction <add>, %27, %cst_17 [1] : vector<2x8xf32> to vector<2xf32>
    %29 = vector.shape_cast %28 : vector<2xf32> to vector<2x1xf32>
    %30 = tpu.reciprocal %29 {approx = true} : vector<2x1xf32> -> vector<2x1xf32>
    %31 = vector.broadcast %30 : vector<2x1xf32> to vector<2x8xf32>
    %32 = arith.mulf %27, %31 : vector<2x8xf32>
    %c0_18 = arith.constant 0 : index
    %c0_19 = arith.constant 0 : index
    %33 = vector.load %arg23[%c0_18, %c0_19] : memref<2x8xf32, #tpu.memory_space<vmem>>, vector<2x8xf32>
    tpu.vector_store %arg23[%c0_18, %c0_19], %32 {strides = array<i32>} : memref<2x8xf32, #tpu.memory_space<vmem>>, vector<2x8xf32>,
    %34 = vector.shape_cast %32 : vector<2x8xf32> to vector<2x8x1xf32>
    %35 = vector.broadcast %34 : vector<2x8x1xf32> to vector<2x8x64xf32>
    %36 = arith.mulf %35, %1 : vector<2x8x64xf32>
    %cst_20 = arith.constant dense<0.000000e+00> : vector<2x64xf32>
    %37 = vector.multi_reduction <add>, %36, %cst_20 [1] : vector<2x8x64xf32> to vector<2x64xf32>
    %c0_21 = arith.constant 0 : index
    %c0_22 = arith.constant 0 : index
    %c0_23 = arith.constant 0 : index
    %38 = vector.load %arg2[%c0_21, %c0_22, %c0_23] : memref<2x2x32xf32, #tpu.memory_space<vmem>>, vector<1x2x32xf32>
    %39 = vector.shape_cast %38 : vector<1x2x32xf32> to vector<2x32xf32>
    %c0_24 = arith.constant 0 : index
    %c0_25 = arith.constant 0 : index
    %40 = vector.load %arg8[%c0_24, %c0_25] : memref<16x96xf32, #tpu.memory_space<vmem>>, vector<16x96xf32>
    %cst_26 = arith.constant dense<0.000000e+00> : vector<2x96xf32>
    %41 = tpu.matmul %0, %40, %cst_26 {dimension_numbers = #tpu.dot_dimension_numbers<[1], [0], [0], [1], [0, 0, 1, 1], [], []>} : vector<2x16xf32>, vector<16x96xf32>, vector<2x96xf32> -> vector<2x96xf32>
    %c0_27 = arith.constant 0 : index
    %c0_28 = arith.constant 0 : index
    %42 = vector.load %arg9[%c0_27, %c0_28] : memref<64x96xf32, #tpu.memory_space<vmem>>, vector<64x96xf32>
    %cst_29 = arith.constant dense<0.000000e+00> : vector<2x96xf32>
    %43 = tpu.matmul %37, %42, %cst_29 {dimension_numbers = #tpu.dot_dimension_numbers<[1], [0], [0], [1], [0, 0, 1, 1], [], []>} : vector<2x64xf32>, vector<64x96xf32>, vector<2x96xf32> -> vector<2x96xf32>
    %44 = arith.addf %41, %43 : vector<2x96xf32>
    %c0_30 = arith.constant 0 : index
    %c0_31 = arith.constant 0 : index
    %45 = vector.load %arg11[%c0_30, %c0_31] : memref<1x96xf32, #tpu.memory_space<vmem>>, vector<1x96xf32>
    %46 = vector.broadcast %45 : vector<1x96xf32> to vector<2x96xf32>
    %47 = arith.addf %44, %46 : vector<2x96xf32>
    %c0_32 = arith.constant 0 : index
    %c0_33 = arith.constant 0 : index
    %48 = vector.load %arg10[%c0_32, %c0_33] : memref<32x96xf32, #tpu.memory_space<vmem>>, vector<32x96xf32>
    %cst_34 = arith.constant dense<0.000000e+00> : vector<2x96xf32>
    %49 = tpu.matmul %39, %48, %cst_34 {dimension_numbers = #tpu.dot_dimension_numbers<[1], [0], [0], [1], [0, 0, 1, 1], [], []>} : vector<2x32xf32>, vector<32x96xf32>, vector<2x96xf32> -> vector<2x96xf32>
    %c0_35 = arith.constant 0 : index
    %c0_36 = arith.constant 0 : index
    %50 = vector.load %arg12[%c0_35, %c0_36] : memref<1x96xf32, #tpu.memory_space<vmem>>, vector<1x96xf32>
    %51 = vector.broadcast %50 : vector<1x96xf32> to vector<2x96xf32>
    %52 = arith.addf %49, %51 : vector<2x96xf32>
    %53 = vector.extract_strided_slice %47 {offsets = [0, 0], sizes = [2, 32], strides = [1, 1]} : vector<2x96xf32> to vector<2x32xf32>
    %54 = vector.extract_strided_slice %52 {offsets = [0, 0], sizes = [2, 32], strides = [1, 1]} : vector<2x96xf32> to vector<2x32xf32>
    %55 = arith.addf %53, %54 : vector<2x32xf32>
    %56 = arith.negf %55 : vector<2x32xf32>
    %57 = math.exp %56 : vector<2x32xf32>
    %cst_37 = arith.constant 1.000000e+00 : f32
    %58 = vector.broadcast %cst_37 : f32 to vector<2x32xf32>
    %59 = arith.addf %58, %57 : vector<2x32xf32>
    %60 = arith.divf %58, %59 : vector<2x32xf32>
    %61 = vector.extract_strided_slice %47 {offsets = [0, 32], sizes = [2, 32], strides = [1, 1]} : vector<2x96xf32> to vector<2x32xf32>
    %62 = vector.extract_strided_slice %52 {offsets = [0, 32], sizes = [2, 32], strides = [1, 1]} : vector<2x96xf32> to vector<2x32xf32>
    %63 = arith.addf %61, %62 : vector<2x32xf32>
    %64 = arith.negf %63 : vector<2x32xf32>
    %65 = math.exp %64 : vector<2x32xf32>
    %cst_38 = arith.constant 1.000000e+00 : f32
    %66 = vector.broadcast %cst_38 : f32 to vector<2x32xf32>
    %67 = arith.addf %66, %65 : vector<2x32xf32>
    %68 = arith.divf %66, %67 : vector<2x32xf32>
    %69 = vector.extract_strided_slice %47 {offsets = [0, 64], sizes = [2, 32], strides = [1, 1]} : vector<2x96xf32> to vector<2x32xf32>
    %70 = vector.extract_strided_slice %52 {offsets = [0, 64], sizes = [2, 32], strides = [1, 1]} : vector<2x96xf32> to vector<2x32xf32>
    %71 = arith.mulf %60, %70 : vector<2x32xf32>
    %72 = arith.addf %69, %71 : vector<2x32xf32>
    %73 = math.tanh %72 : vector<2x32xf32>
    %cst_39 = arith.constant 1.000000e+00 : f32
    %74 = vector.broadcast %cst_39 : f32 to vector<2x32xf32>
    %75 = arith.subf %74, %68 : vector<2x32xf32>
    %76 = arith.mulf %75, %73 : vector<2x32xf32>
    %77 = arith.mulf %68, %39 : vector<2x32xf32>
    %78 = arith.addf %76, %77 : vector<2x32xf32>
    %c0_40 = arith.constant 0 : index
    %c0_41 = arith.constant 0 : index
    %c0_42 = arith.constant 0 : index
    %79 = vector.load %arg22[%c0_40, %c0_41, %c0_42] : memref<2x2x32xf32, #tpu.memory_space<vmem>>, vector<1x2x32xf32>
    %80 = vector.shape_cast %79 : vector<1x2x32xf32> to vector<2x32xf32>
    %81 = vector.shape_cast %78 : vector<2x32xf32> to vector<1x2x32xf32>
    tpu.vector_store %arg22[%c0_40, %c0_41, %c0_42], %81 {strides = array<i32>} : memref<2x2x32xf32, #tpu.memory_space<vmem>>, vector<1x2x32xf32>,
    %c1_43 = arith.constant 1 : index
    %c0_44 = arith.constant 0 : index
    %c0_45 = arith.constant 0 : index
    %82 = vector.load %arg2[%c1_43, %c0_44, %c0_45] : memref<2x2x32xf32, #tpu.memory_space<vmem>>, vector<1x2x32xf32>
    %83 = vector.shape_cast %82 : vector<1x2x32xf32> to vector<2x32xf32>
    %c0_46 = arith.constant 0 : index
    %c0_47 = arith.constant 0 : index
    %84 = vector.load %arg13[%c0_46, %c0_47] : memref<32x96xf32, #tpu.memory_space<vmem>>, vector<32x96xf32>
    %cst_48 = arith.constant dense<0.000000e+00> : vector<2x96xf32>
    %85 = tpu.matmul %78, %84, %cst_48 {dimension_numbers = #tpu.dot_dimension_numbers<[1], [0], [0], [1], [0, 0, 1, 1], [], []>} : vector<2x32xf32>, vector<32x96xf32>, vector<2x96xf32> -> vector<2x96xf32>
    %c0_49 = arith.constant 0 : index
    %c0_50 = arith.constant 0 : index
    %86 = vector.load %arg15[%c0_49, %c0_50] : memref<1x96xf32, #tpu.memory_space<vmem>>, vector<1x96xf32>
    %87 = vector.broadcast %86 : vector<1x96xf32> to vector<2x96xf32>
    %88 = arith.addf %85, %87 : vector<2x96xf32>
    %c0_51 = arith.constant 0 : index
    %c0_52 = arith.constant 0 : index
    %89 = vector.load %arg14[%c0_51, %c0_52] : memref<32x96xf32, #tpu.memory_space<vmem>>, vector<32x96xf32>
    %cst_53 = arith.constant dense<0.000000e+00> : vector<2x96xf32>
    %90 = tpu.matmul %83, %89, %cst_53 {dimension_numbers = #tpu.dot_dimension_numbers<[1], [0], [0], [1], [0, 0, 1, 1], [], []>} : vector<2x32xf32>, vector<32x96xf32>, vector<2x96xf32> -> vector<2x96xf32>
    %c0_54 = arith.constant 0 : index
    %c0_55 = arith.constant 0 : index
    %91 = vector.load %arg16[%c0_54, %c0_55] : memref<1x96xf32, #tpu.memory_space<vmem>>, vector<1x96xf32>
    %92 = vector.broadcast %91 : vector<1x96xf32> to vector<2x96xf32>
    %93 = arith.addf %90, %92 : vector<2x96xf32>
    %94 = vector.extract_strided_slice %88 {offsets = [0, 0], sizes = [2, 32], strides = [1, 1]} : vector<2x96xf32> to vector<2x32xf32>
    %95 = vector.extract_strided_slice %93 {offsets = [0, 0], sizes = [2, 32], strides = [1, 1]} : vector<2x96xf32> to vector<2x32xf32>
    %96 = arith.addf %94, %95 : vector<2x32xf32>
    %97 = arith.negf %96 : vector<2x32xf32>
    %98 = math.exp %97 : vector<2x32xf32>
    %cst_56 = arith.constant 1.000000e+00 : f32
    %99 = vector.broadcast %cst_56 : f32 to vector<2x32xf32>
    %100 = arith.addf %99, %98 : vector<2x32xf32>
    %101 = arith.divf %99, %100 : vector<2x32xf32>
    %102 = vector.extract_strided_slice %88 {offsets = [0, 32], sizes = [2, 32], strides = [1, 1]} : vector<2x96xf32> to vector<2x32xf32>
    %103 = vector.extract_strided_slice %93 {offsets = [0, 32], sizes = [2, 32], strides = [1, 1]} : vector<2x96xf32> to vector<2x32xf32>
    %104 = arith.addf %102, %103 : vector<2x32xf32>
    %105 = arith.negf %104 : vector<2x32xf32>
    %106 = math.exp %105 : vector<2x32xf32>
    %cst_57 = arith.constant 1.000000e+00 : f32
    %107 = vector.broadcast %cst_57 : f32 to vector<2x32xf32>
    %108 = arith.addf %107, %106 : vector<2x32xf32>
    %109 = arith.divf %107, %108 : vector<2x32xf32>
    %110 = vector.extract_strided_slice %88 {offsets = [0, 64], sizes = [2, 32], strides = [1, 1]} : vector<2x96xf32> to vector<2x32xf32>
    %111 = vector.extract_strided_slice %93 {offsets = [0, 64], sizes = [2, 32], strides = [1, 1]} : vector<2x96xf32> to vector<2x32xf32>
    %112 = arith.mulf %101, %111 : vector<2x32xf32>
    %113 = arith.addf %110, %112 : vector<2x32xf32>
    %114 = math.tanh %113 : vector<2x32xf32>
    %cst_58 = arith.constant 1.000000e+00 : f32
    %115 = vector.broadcast %cst_58 : f32 to vector<2x32xf32>
    %116 = arith.subf %115, %109 : vector<2x32xf32>
    %117 = arith.mulf %116, %114 : vector<2x32xf32>
    %118 = arith.mulf %109, %83 : vector<2x32xf32>
    %119 = arith.addf %117, %118 : vector<2x32xf32>
    %c1_59 = arith.constant 1 : index
    %c0_60 = arith.constant 0 : index
    %c0_61 = arith.constant 0 : index
    %120 = vector.load %arg22[%c1_59, %c0_60, %c0_61] : memref<2x2x32xf32, #tpu.memory_space<vmem>>, vector<1x2x32xf32>
    %121 = vector.shape_cast %120 : vector<1x2x32xf32> to vector<2x32xf32>
    %122 = vector.shape_cast %119 : vector<2x32xf32> to vector<1x2x32xf32>
    tpu.vector_store %arg22[%c1_59, %c0_60, %c0_61], %122 {strides = array<i32>} : memref<2x2x32xf32, #tpu.memory_space<vmem>>, vector<1x2x32xf32>,
    %c0_62 = arith.constant 0 : index
    %c0_63 = arith.constant 0 : index
    %123 = vector.load %arg17[%c0_62, %c0_63] : memref<16x24xf32, #tpu.memory_space<vmem>>, vector<16x24xf32>
    %cst_64 = arith.constant dense<0.000000e+00> : vector<2x24xf32>
    %124 = tpu.matmul %0, %123, %cst_64 {dimension_numbers = #tpu.dot_dimension_numbers<[1], [0], [0], [1], [0, 0, 1, 1], [], []>} : vector<2x16xf32>, vector<16x24xf32>, vector<2x24xf32> -> vector<2x24xf32>
    %c0_65 = arith.constant 0 : index
    %c0_66 = arith.constant 0 : index
    %125 = vector.load %arg18[%c0_65, %c0_66] : memref<64x24xf32, #tpu.memory_space<vmem>>, vector<64x24xf32>
    %cst_67 = arith.constant dense<0.000000e+00> : vector<2x24xf32>
    %126 = tpu.matmul %37, %125, %cst_67 {dimension_numbers = #tpu.dot_dimension_numbers<[1], [0], [0], [1], [0, 0, 1, 1], [], []>} : vector<2x64xf32>, vector<64x24xf32>, vector<2x24xf32> -> vector<2x24xf32>
    %127 = arith.addf %124, %126 : vector<2x24xf32>
    %c0_68 = arith.constant 0 : index
    %c0_69 = arith.constant 0 : index
    %128 = vector.load %arg19[%c0_68, %c0_69] : memref<32x24xf32, #tpu.memory_space<vmem>>, vector<32x24xf32>
    %cst_70 = arith.constant dense<0.000000e+00> : vector<2x24xf32>
    %129 = tpu.matmul %119, %128, %cst_70 {dimension_numbers = #tpu.dot_dimension_numbers<[1], [0], [0], [1], [0, 0, 1, 1], [], []>} : vector<2x32xf32>, vector<32x24xf32>, vector<2x24xf32> -> vector<2x24xf32>
    %130 = arith.addf %127, %129 : vector<2x24xf32>
    %c0_71 = arith.constant 0 : index
    %c0_72 = arith.constant 0 : index
    %131 = vector.load %arg20[%c0_71, %c0_72] : memref<1x24xf32, #tpu.memory_space<vmem>>, vector<1x24xf32>
    %132 = vector.broadcast %131 : vector<1x24xf32> to vector<2x24xf32>
    %133 = arith.addf %130, %132 : vector<2x24xf32>
    %c0_73 = arith.constant 0 : index
    %c0_74 = arith.constant 0 : index
    %134 = vector.load %arg21[%c0_73, %c0_74] : memref<2x24xf32, #tpu.memory_space<vmem>>, vector<2x24xf32>
    tpu.vector_store %arg21[%c0_73, %c0_74], %133 {strides = array<i32>} : memref<2x24xf32, #tpu.memory_space<vmem>>, vector<2x24xf32>,
    return
  }
  func.func @transform_0(%arg0: i32) -> (i32, i32) {
    %c0_i32 = arith.constant 0 : i32
    %c0_i32_0 = arith.constant 0 : i32
    return %arg0, %c0_i32 : i32, i32
  }
  func.func @transform_1(%arg0: i32) -> (i32, i32, i32) {
    %c0_i32 = arith.constant 0 : i32
    %c0_i32_0 = arith.constant 0 : i32
    %c0_i32_1 = arith.constant 0 : i32
    return %c0_i32, %arg0, %c0_i32_0 : i32, i32, i32
  }
  func.func @transform_2(%arg0: i32) -> (i32, i32, i32) {
    %c0_i32 = arith.constant 0 : i32
    %c0_i32_0 = arith.constant 0 : i32
    %c0_i32_1 = arith.constant 0 : i32
    return %arg0, %c0_i32, %c0_i32_0 : i32, i32, i32
  }
  func.func @transform_3(%arg0: i32) -> (i32, i32) {
    %c0_i32 = arith.constant 0 : i32
    %c0_i32_0 = arith.constant 0 : i32
    %c0_i32_1 = arith.constant 0 : i32
    return %c0_i32, %c0_i32_0 : i32, i32
  }
  func.func @transform_4(%arg0: i32) -> (i32, i32) {
    %c0_i32 = arith.constant 0 : i32
    %c0_i32_0 = arith.constant 0 : i32
    %c0_i32_1 = arith.constant 0 : i32
    return %c0_i32, %c0_i32_0 : i32, i32
  }
  func.func @transform_5(%arg0: i32) -> (i32, i32) {
    %c0_i32 = arith.constant 0 : i32
    %c0_i32_0 = arith.constant 0 : i32
    %c0_i32_1 = arith.constant 0 : i32
    return %c0_i32, %c0_i32_0 : i32, i32
  }
  func.func @transform_6(%arg0: i32) -> (i32, i32) {
    %c0_i32 = arith.constant 0 : i32
    %c0_i32_0 = arith.constant 0 : i32
    %c0_i32_1 = arith.constant 0 : i32
    return %c0_i32, %c0_i32_0 : i32, i32
  }
  func.func @transform_7(%arg0: i32) -> (i32, i32) {
    %c0_i32 = arith.constant 0 : i32
    %c0_i32_0 = arith.constant 0 : i32
    %c0_i32_1 = arith.constant 0 : i32
    return %c0_i32, %c0_i32_0 : i32, i32
  }
  func.func @transform_8(%arg0: i32) -> (i32, i32) {
    %c0_i32 = arith.constant 0 : i32
    %c0_i32_0 = arith.constant 0 : i32
    %c0_i32_1 = arith.constant 0 : i32
    return %c0_i32, %c0_i32_0 : i32, i32
  }
  func.func @transform_9(%arg0: i32) -> (i32, i32) {
    %c0_i32 = arith.constant 0 : i32
    %c0_i32_0 = arith.constant 0 : i32
    %c0_i32_1 = arith.constant 0 : i32
    return %c0_i32, %c0_i32_0 : i32, i32
  }
  func.func @transform_10(%arg0: i32) -> (i32, i32) {
    %c0_i32 = arith.constant 0 : i32
    %c0_i32_0 = arith.constant 0 : i32
    %c0_i32_1 = arith.constant 0 : i32
    return %c0_i32, %c0_i32_0 : i32, i32
  }
  func.func @transform_11(%arg0: i32) -> (i32, i32) {
    %c0_i32 = arith.constant 0 : i32
    %c0_i32_0 = arith.constant 0 : i32
    %c0_i32_1 = arith.constant 0 : i32
    return %c0_i32, %c0_i32_0 : i32, i32
  }
  func.func @transform_12(%arg0: i32) -> (i32, i32) {
    %c0_i32 = arith.constant 0 : i32
    %c0_i32_0 = arith.constant 0 : i32
    %c0_i32_1 = arith.constant 0 : i32
    return %c0_i32, %c0_i32_0 : i32, i32
  }
  func.func @transform_13(%arg0: i32) -> (i32, i32) {
    %c0_i32 = arith.constant 0 : i32
    %c0_i32_0 = arith.constant 0 : i32
    %c0_i32_1 = arith.constant 0 : i32
    return %c0_i32, %c0_i32_0 : i32, i32
  }
  func.func @transform_14(%arg0: i32) -> (i32, i32) {
    %c0_i32 = arith.constant 0 : i32
    %c0_i32_0 = arith.constant 0 : i32
    %c0_i32_1 = arith.constant 0 : i32
    return %c0_i32, %c0_i32_0 : i32, i32
  }
  func.func @transform_15(%arg0: i32) -> (i32, i32) {
    %c0_i32 = arith.constant 0 : i32
    %c0_i32_0 = arith.constant 0 : i32
    %c0_i32_1 = arith.constant 0 : i32
    return %c0_i32, %c0_i32_0 : i32, i32
  }
  func.func @transform_16(%arg0: i32) -> (i32, i32) {
    %c0_i32 = arith.constant 0 : i32
    %c0_i32_0 = arith.constant 0 : i32
    %c0_i32_1 = arith.constant 0 : i32
    return %c0_i32, %c0_i32_0 : i32, i32
  }
  func.func @transform_17(%arg0: i32) -> (i32, i32) {
    %c0_i32 = arith.constant 0 : i32
    %c0_i32_0 = arith.constant 0 : i32
    %c0_i32_1 = arith.constant 0 : i32
    return %c0_i32, %c0_i32_0 : i32, i32
  }
  func.func @transform_18(%arg0: i32) -> (i32, i32) {
    %c0_i32 = arith.constant 0 : i32
    %c0_i32_0 = arith.constant 0 : i32
    %c0_i32_1 = arith.constant 0 : i32
    return %c0_i32, %c0_i32_0 : i32, i32
  }
  func.func @transform_19(%arg0: i32) -> (i32, i32) {
    %c0_i32 = arith.constant 0 : i32
    %c0_i32_0 = arith.constant 0 : i32
    %c0_i32_1 = arith.constant 0 : i32
    return %c0_i32, %c0_i32_0 : i32, i32
  }
  func.func @transform_20(%arg0: i32) -> (i32, i32) {
    %c0_i32 = arith.constant 0 : i32
    %c0_i32_0 = arith.constant 0 : i32
    return %arg0, %c0_i32 : i32, i32
  }
  func.func @transform_21(%arg0: i32) -> (i32, i32, i32) {
    %c0_i32 = arith.constant 0 : i32
    %c0_i32_0 = arith.constant 0 : i32
    %c0_i32_1 = arith.constant 0 : i32
    return %c0_i32, %arg0, %c0_i32_0 : i32, i32, i32
  }
  func.func @transform_22(%arg0: i32) -> (i32, i32) {
    %c0_i32 = arith.constant 0 : i32
    %c0_i32_0 = arith.constant 0 : i32
    return %arg0, %c0_i32 : i32, i32
  }
}

</mosaic_0001>

<llo_original>
// kernel: tpu_custom_call.1
$region0: #{tpu_custom_call.1}
  #allocation0 [shape = 'u32[]', space=smem, size = 0x4, offset = 0x4, fixed_abs, tag = 'smem constant byte address 0x4 - core index']
  #allocation1 [shape = 'u32[144,128]{1,0:T(1,128)}', space=vmem, size = 0x12000, scoped, tag = 'internal scratch']
  %s0 = inlined_call_operand.hbm [shape: f32[2,16], index: 0, kind: input, shape index: {}]
  %s1 = inlined_call_operand.hbm [shape: f32[2,2,32], index: 1, kind: input, shape index: {}]
  %s2 = inlined_call_operand.hbm [shape: f32[2,8,64], index: 2, kind: input, shape index: {}]
  %s3 = inlined_call_operand.vmem [shape: f32[32,32], index: 3, kind: input, shape index: {}]
  %s4 = inlined_call_operand.vmem [shape: f32[64,32], index: 4, kind: input, shape index: {}]
  %s5 = inlined_call_operand.vmem [shape: f32[1,32], index: 5, kind: input, shape index: {}]
  %s6 = inlined_call_operand.hbm [shape: f32[1,32], index: 6, kind: input, shape index: {}]
  %s7 = inlined_call_operand.vmem [shape: f32[16,96], index: 7, kind: input, shape index: {}]
  %s8 = inlined_call_operand.vmem [shape: f32[64,96], index: 8, kind: input, shape index: {}]
  %s9 = inlined_call_operand.vmem [shape: f32[32,96], index: 9, kind: input, shape index: {}]
  %s10 = inlined_call_operand.hbm [shape: f32[1,96], index: 10, kind: input, shape index: {}]
  %s11 = inlined_call_operand.hbm [shape: f32[1,96], index: 11, kind: input, shape index: {}]
  %s12 = inlined_call_operand.vmem [shape: f32[32,96], index: 12, kind: input, shape index: {}]
  %s13 = inlined_call_operand.vmem [shape: f32[32,96], index: 13, kind: input, shape index: {}]
  %s14 = inlined_call_operand.vmem [shape: f32[1,96], index: 14, kind: input, shape index: {}]
  %s15 = inlined_call_operand.vmem [shape: f32[1,96], index: 15, kind: input, shape index: {}]
  %s16 = inlined_call_operand.hbm [shape: f32[16,24], index: 16, kind: input, shape index: {}]
  %s17 = inlined_call_operand.vmem [shape: f32[64,24], index: 17, kind: input, shape index: {}]
  %s18 = inlined_call_operand.vmem [shape: f32[32,24], index: 18, kind: input, shape index: {}]
  %s19 = inlined_call_operand.vmem [shape: f32[1,24], index: 19, kind: input, shape index: {}]
  %s20 = inlined_call_operand.hbm [shape: f32[2,24], index: 20, kind: output, shape index: {0}]
  %s21 = inlined_call_operand.hbm [shape: f32[2,2,32], index: 21, kind: output, shape index: {1}]
  %s22 = inlined_call_operand.hbm [shape: f32[2,8], index: 22, kind: output, shape index: {2}]
  %23 = xla_tuple %s20, %s21, %s22
  %s24 = sld [smem:[#allocation0]]
  $region134: #{tpu_custom_call.1} parent=0
    _
  %s26 = ssub.s32 1, %s24
  %s27 = scalar_select 0, %s26, %s24
  $region1: #{tpu_custom_call.1} parent=0
    #allocation2 [shape = 'u8[1024]{0}', space=vmem, size = 0x400, scoped, tag = 'input window, operand 0, single buffered']
    #allocation3 [shape = 's32[1]{0}', space=sflag, size = 0x4, scoped, tag = 'scoped memory for tpu_custom_call.1']
    #allocation4 [shape = 's32[1]{0}', space=sflag, size = 0x4, scoped, tag = 'scoped memory for tpu_custom_call.1']
    #allocation5 [shape = 'u8[2048]{0}', space=vmem, size = 0x800, scoped, tag = 'input window, operand 1, single buffered']
    #allocation6 [shape = 's32[1]{0}', space=sflag, size = 0x4, scoped, tag = 'scoped memory for tpu_custom_call.1']
    #allocation7 [shape = 'u8[8192]{0}', space=vmem, size = 0x2000, scoped, tag = 'input window, operand 2, single buffered']
    #allocation8 [shape = 'u8[512]{0}', space=vmem, size = 0x400, scoped, tag = 'input window, operand 6, single buffered']
    #allocation9 [shape = 's32[1]{0}', space=sflag, size = 0x4, scoped, tag = 'scoped memory for tpu_custom_call.1']
    #allocation10 [shape = 'u8[512]{0}', space=vmem, size = 0x400, scoped, tag = 'input window, operand 10, single buffered']
    #allocation11 [shape = 'u8[512]{0}', space=vmem, size = 0x400, scoped, tag = 'input window, operand 11, single buffered']
    #allocation12 [shape = 's32[1]{0}', space=sflag, size = 0x4, scoped, tag = 'scoped memory for tpu_custom_call.1']
    #allocation13 [shape = 'u8[8192]{0}', space=vmem, size = 0x2000, scoped, tag = 'input window, operand 16, single buffered']
    #allocation14 [shape = 'u8[1024]{0}', space=vmem, size = 0x400, scoped, tag = 'output window, operand 0, single buffered']
    #allocation15 [shape = 'u8[2048]{0}', space=vmem, size = 0x800, scoped, tag = 'output window, operand 1, single buffered']
    #allocation16 [shape = 's32[1]{0}', space=sflag, size = 0x4, scoped, tag = 'scoped memory for tpu_custom_call.1']
    #allocation17 [shape = 'u8[1024]{0}', space=vmem, size = 0x400, scoped, tag = 'output window, operand 2, single buffered']
    %28 = vsyncpa [#allocation3], 0
    %29 = vsyncpa [#allocation6], 0
    %30 = vsyncpa [#allocation9], 0
    %31 = vsyncpa [#allocation12], 0
    %32 = vsyncpa [#allocation4], 0
    %33 = vsyncpa [#allocation16], 0
    // Predicated region
    $region2: #{tpu_custom_call.1} parent=1 // pred_check
      _
    $region3: #{tpu_custom_call.1} parent=1 // pred_check_branch
      %35 = sbr.rel (0) target = $region5
    $region4: #{tpu_custom_call.1} parent=1 // pred_region
      %s37 = ssub.s32 32, 32
      %38 = vsyncadd [#allocation3], %s37
      %s40 = sshll.u32 [#allocation2], 4
      %s41 = int_to_ptr.vmem [resolvable:$true] %s40
      %43 = dma.hbm_to_vmem [thread:$0]  %s0, 32, %s41, [#allocation3]
    $region5: #{tpu_custom_call.1} parent=1 // pred_fallthru
      _
    // Predicated region
    $region6: #{tpu_custom_call.1} parent=1 // pred_check
      _
    $region7: #{tpu_custom_call.1} parent=1 // pred_check_branch
      %45 = sbr.rel (0) target = $region9
    $region8: #{tpu_custom_call.1} parent=1 // pred_region
      %s47 = ssub.s32 64, 64
      %48 = vsyncadd [#allocation6], %s47
      %s49 = sshll.u32 [#allocation5], 4
      %s50 = int_to_ptr.vmem [resolvable:$true] %s49
      %55 = dma.hbm_to_vmem [thread:$0]  %s1, 64, %s50, [#allocation6], 32, 32, 2
    $region9: #{tpu_custom_call.1} parent=1 // pred_fallthru
      _
    // Predicated region
    $region10: #{tpu_custom_call.1} parent=1 // pred_check
      _
    $region11: #{tpu_custom_call.1} parent=1 // pred_check_branch
      %57 = sbr.rel (0) target = $region13
    $region12: #{tpu_custom_call.1} parent=1 // pred_region
      %s59 = ssub.s32 256, 256
      %60 = vsyncadd [#allocation6], %s59
      %s61 = sshll.u32 [#allocation7], 4
      %s62 = int_to_ptr.vmem [resolvable:$true] %s61
      %67 = dma.hbm_to_vmem [thread:$0]  %s2, 256, %s62, [#allocation6], 128, 128, 8
    $region13: #{tpu_custom_call.1} parent=1 // pred_fallthru
      _
    // Predicated region
    $region14: #{tpu_custom_call.1} parent=1 // pred_check
      _
    $region15: #{tpu_custom_call.1} parent=1 // pred_check_branch
      %69 = sbr.rel (0) target = $region17
    $region16: #{tpu_custom_call.1} parent=1 // pred_region
      _
    $region17: #{tpu_custom_call.1} parent=1 // pred_fallthru
      _
    // Predicated region
    $region18: #{tpu_custom_call.1} parent=1 // pred_check
      _
    $region19: #{tpu_custom_call.1} parent=1 // pred_check_branch
      %71 = sbr.rel (0) target = $region21
    $region20: #{tpu_custom_call.1} parent=1 // pred_region
      _
    $region21: #{tpu_custom_call.1} parent=1 // pred_fallthru
      _
    // Predicated region
    $region22: #{tpu_custom_call.1} parent=1 // pred_check
      _
    $region23: #{tpu_custom_call.1} parent=1 // pred_check_branch
      %73 = sbr.rel (0) target = $region25
    $region24: #{tpu_custom_call.1} parent=1 // pred_region
      _
    $region25: #{tpu_custom_call.1} parent=1 // pred_fallthru
      _
    // Predicated region
    $region26: #{tpu_custom_call.1} parent=1 // pred_check
      _
    $region27: #{tpu_custom_call.1} parent=1 // pred_check_branch
      %75 = sbr.rel (0) target = $region29
    $region28: #{tpu_custom_call.1} parent=1 // pred_region
      %s77 = ssub.s32 16, 16
      %78 = vsyncadd [#allocation9], %s77
      %s80 = sshll.u32 [#allocation8], 4
      %s81 = int_to_ptr.vmem [resolvable:$true] %s80
      %83 = dma.hbm_to_vmem [thread:$0]  %s6, 16, %s81, [#allocation9]
    $region29: #{tpu_custom_call.1} parent=1 // pred_fallthru
      _
    // Predicated region
    $region30: #{tpu_custom_call.1} parent=1 // pred_check
      _
    $region31: #{tpu_custom_call.1} parent=1 // pred_check_branch
      %85 = sbr.rel (0) target = $region33
    $region32: #{tpu_custom_call.1} parent=1 // pred_region
      _
    $region33: #{tpu_custom_call.1} parent=1 // pred_fallthru
      _
    // Predicated region
    $region34: #{tpu_custom_call.1} parent=1 // pred_check
      _
    $region35: #{tpu_custom_call.1} parent=1 // pred_check_branch
      %87 = sbr.rel (0) target = $region37
    $region36: #{tpu_custom_call.1} parent=1 // pred_region
      _
    $region37: #{tpu_custom_call.1} parent=1 // pred_fallthru
      _
    // Predicated region
    $region38: #{tpu_custom_call.1} parent=1 // pred_check
      _
    $region39: #{tpu_custom_call.1} parent=1 // pred_check_branch
      %89 = sbr.rel (0) target = $region41
    $region40: #{tpu_custom_call.1} parent=1 // pred_region
      _
    $region41: #{tpu_custom_call.1} parent=1 // pred_fallthru
      _
    // Predicated region
    $region42: #{tpu_custom_call.1} parent=1 // pred_check
      _
    $region43: #{tpu_custom_call.1} parent=1 // pred_check_branch
      %91 = sbr.rel (0) target = $region45
    $region44: #{tpu_custom_call.1} parent=1 // pred_region
      %s93 = ssub.s32 16, 16
      %94 = vsyncadd [#allocation9], %s93
      %s96 = sshll.u32 [#allocation10], 4
      %s97 = int_to_ptr.vmem [resolvable:$true] %s96
      %99 = dma.hbm_to_vmem [thread:$0]  %s10, 16, %s97, [#allocation9]
    $region45: #{tpu_custom_call.1} parent=1 // pred_fallthru
      _
    // Predicated region
    $region46: #{tpu_custom_call.1} parent=1 // pred_check
      _
    $region47: #{tpu_custom_call.1} parent=1 // pred_check_branch
      %101 = sbr.rel (0) target = $region49
    $region48: #{tpu_custom_call.1} parent=1 // pred_region
      %s103 = ssub.s32 16, 16
      %104 = vsyncadd [#allocation12], %s103
      %s106 = sshll.u32 [#allocation11], 4
      %s107 = int_to_ptr.vmem [resolvable:$true] %s106
      %109 = dma.hbm_to_vmem [thread:$0]  %s11, 16, %s107, [#allocation12]
    $region49: #{tpu_custom_call.1} parent=1 // pred_fallthru
      _
    // Predicated region
    $region50: #{tpu_custom_call.1} parent=1 // pred_check
      _
    $region51: #{tpu_custom_call.1} parent=1 // pred_check_branch
      %111 = sbr.rel (0) target = $region53
    $region52: #{tpu_custom_call.1} parent=1 // pred_region
      _
    $region53: #{tpu_custom_call.1} parent=1 // pred_fallthru
      _
    // Predicated region
    $region54: #{tpu_custom_call.1} parent=1 // pred_check
      _
    $region55: #{tpu_custom_call.1} parent=1 // pred_check_branch
      %113 = sbr.rel (0) target = $region57
    $region56: #{tpu_custom_call.1} parent=1 // pred_region
      _
    $region57: #{tpu_custom_call.1} parent=1 // pred_fallthru
      _
    // Predicated region
    $region58: #{tpu_custom_call.1} parent=1 // pred_check
      _
    $region59: #{tpu_custom_call.1} parent=1 // pred_check_branch
      %115 = sbr.rel (0) target = $region61
    $region60: #{tpu_custom_call.1} parent=1 // pred_region
      _
    $region61: #{tpu_custom_call.1} parent=1 // pred_fallthru
      _
    // Predicated region
    $region62: #{tpu_custom_call.1} parent=1 // pred_check
      _
    $region63: #{tpu_custom_call.1} parent=1 // pred_check_branch
      %117 = sbr.rel (0) target = $region65
    $region64: #{tpu_custom_call.1} parent=1 // pred_region
      _
    $region65: #{tpu_custom_call.1} parent=1 // pred_fallthru
      _
    // Predicated region
    $region66: #{tpu_custom_call.1} parent=1 // pred_check
      _
    $region67: #{tpu_custom_call.1} parent=1 // pred_check_branch
      %119 = sbr.rel (0) target = $region69
    $region68: #{tpu_custom_call.1} parent=1 // pred_region
      %s121 = ssub.s32 256, 256
      %122 = vsyncadd [#allocation12], %s121
      %s123 = sshll.u32 [#allocation13], 4
      %s124 = int_to_ptr.vmem [resolvable:$true] %s123
      %129 = dma.hbm_to_vmem [thread:$0]  %s16, 256, %s124, [#allocation12], 128, 128, 8
    $region69: #{tpu_custom_call.1} parent=1 // pred_fallthru
      _
    // Predicated region
    $region70: #{tpu_custom_call.1} parent=1 // pred_check
      _
    $region71: #{tpu_custom_call.1} parent=1 // pred_check_branch
      %131 = sbr.rel (0) target = $region73
    $region72: #{tpu_custom_call.1} parent=1 // pred_region
      _
    $region73: #{tpu_custom_call.1} parent=1 // pred_fallthru
      _
    // Predicated region
    $region74: #{tpu_custom_call.1} parent=1 // pred_check
      _
    $region75: #{tpu_custom_call.1} parent=1 // pred_check_branch
      %133 = sbr.rel (0) target = $region77
    $region76: #{tpu_custom_call.1} parent=1 // pred_region
      _
    $region77: #{tpu_custom_call.1} parent=1 // pred_fallthru
      _
    // Predicated region
    $region78: #{tpu_custom_call.1} parent=1 // pred_check
      _
    $region79: #{tpu_custom_call.1} parent=1 // pred_check_branch
      %135 = sbr.rel (0) target = $region81
    $region80: #{tpu_custom_call.1} parent=1 // pred_region
      _
    $region81: #{tpu_custom_call.1} parent=1 // pred_fallthru
      _
    // Predicated region
    $region82: #{tpu_custom_call.1} parent=1 // pred_check
      _
    $region83: #{tpu_custom_call.1} parent=1 // pred_check_branch
      %137 = sbr.rel (0) target = $region85
    $region84: #{tpu_custom_call.1} parent=1 // pred_region
      %138 = dma.done [#allocation3], 32
    $region85: #{tpu_custom_call.1} parent=1 // pred_fallthru
      _
    // Predicated region
    $region86: #{tpu_custom_call.1} parent=1 // pred_check
      _
    $region87: #{tpu_custom_call.1} parent=1 // pred_check_branch
      %140 = sbr.rel (0) target = $region89
    $region88: #{tpu_custom_call.1} parent=1 // pred_region
      %141 = dma.done [#allocation6], 64
    $region89: #{tpu_custom_call.1} parent=1 // pred_fallthru
      _
    // Predicated region
    $region90: #{tpu_custom_call.1} parent=1 // pred_check
      _
    $region91: #{tpu_custom_call.1} parent=1 // pred_check_branch
      %143 = sbr.rel (0) target = $region93
    $region92: #{tpu_custom_call.1} parent=1 // pred_region
      %144 = dma.done [#allocation6], 256
    $region93: #{tpu_custom_call.1} parent=1 // pred_fallthru
      _
    // Predicated region
    $region94: #{tpu_custom_call.1} parent=1 // pred_check
      _
    $region95: #{tpu_custom_call.1} parent=1 // pred_check_branch
      %146 = sbr.rel (0) target = $region97
    $region96: #{tpu_custom_call.1} parent=1 // pred_region
      %147 = dma.done [#allocation9], 16
    $region97: #{tpu_custom_call.1} parent=1 // pred_fallthru
      _
    // Predicated region
    $region98: #{tpu_custom_call.1} parent=1 // pred_check
      _
    $region99: #{tpu_custom_call.1} parent=1 // pred_check_branch
      %149 = sbr.rel (0) target = $region101
    $region100: #{tpu_custom_call.1} parent=1 // pred_region
      %150 = dma.done [#allocation9], 16
    $region101: #{tpu_custom_call.1} parent=1 // pred_fallthru
      _
    // Predicated region
    $region102: #{tpu_custom_call.1} parent=1 // pred_check
      _
    $region103: #{tpu_custom_call.1} parent=1 // pred_check_branch
      %152 = sbr.rel (0) target = $region105
    $region104: #{tpu_custom_call.1} parent=1 // pred_region
      %153 = dma.done [#allocation12], 16
    $region105: #{tpu_custom_call.1} parent=1 // pred_fallthru
      _
    // Predicated region
    $region106: #{tpu_custom_call.1} parent=1 // pred_check
      _
    $region107: #{tpu_custom_call.1} parent=1 // pred_check_branch
      %155 = sbr.rel (0) target = $region109
    $region108: #{tpu_custom_call.1} parent=1 // pred_region
      %156 = dma.done [#allocation12], 256
    $region109: #{tpu_custom_call.1} parent=1 // pred_fallthru
      _
    %v157 = vld [vmem:[#allocation2] sm:$0x3]
    %v158 = vld [vmem:[#allocation7] sm:$0xff]
    %v159 = vld [vmem:[#allocation7 + $0x8] sm:$0xff]
    %s160 = scalar_lea.vmem [#allocation5], 2
    %v161 = vld [vmem:[%s160] sm:$0x3]
    %v162 = vld [vmem:[%s4] sm:$0xff]
    %v163 = vld [vmem:[%s4 + $0x8] sm:$0xff]
    %v164 = vld [vmem:[%s4 + $0x10] sm:$0xff]
    %v165 = vld [vmem:[%s4 + $0x18] sm:$0xff]
    %v166 = vld [vmem:[%s4 + $0x20] sm:$0xff]
    %v167 = vld [vmem:[%s4 + $0x28] sm:$0xff]
    %v168 = vld [vmem:[%s4 + $0x30] sm:$0xff]
    %v169 = vld [vmem:[%s4 + $0x38] sm:$0xff]
    %vm170 = vcmask 523264
    %v172 = vsel %vm170, %v158, 0
    %v175 = vsel %vm170, %v159, 0
    %177 = vmatprep.subr.mxu0 0.0
    %178 = vmatpush1.msra.mxu0 %v162
    %179 = vmatprep.subr.mxu0 0.0
    %180 = vmatpush1.msra.mxu0 %v163
    %181 = vmatprep.subr.mxu0 0.0
    %182 = vmatpush1.msra.mxu0 %v164
    %183 = vmatprep.subr.mxu0 0.0
    %184 = vmatpush1.msra.mxu0 %v165
    %185 = vmatprep.subr.mxu0 0.0
    %186 = vmatpush1.msra.mxu0 %v166
    %187 = vmatprep.subr.mxu0 0.0
    %188 = vmatpush1.msra.mxu0 %v167
    %189 = vmatprep.subr.mxu0 0.0
    %190 = vmatpush1.msra.mxu0 %v168
    %191 = vmatprep.subr.mxu0 0.0
    %192 = vmatpush1.msra.mxu0 %v169
    %193 = vmatprep.subr.mxu0 0.0
    %194 = vmatpush1.msra.mxu0 0.0
    %195 = vmatprep.subr.mxu0 0.0
    %196 = vmatpush1.msra.mxu0 0.0
    %197 = vmatprep.subr.mxu0 0.0
    %198 = vmatpush1.msra.mxu0 0.0
    %199 = vmatprep.subr.mxu0 0.0
    %200 = vmatpush1.msra.mxu0 0.0
    %201 = vmatprep.subr.mxu0 0.0
    %202 = vmatpush1.msra.mxu0 0.0
    %203 = vmatprep.subr.mxu0 0.0
    %204 = vmatpush1.msra.mxu0 0.0
    %205 = vmatprep.subr.mxu0 0.0
    %206 = vmatpush1.msra.mxu0 0.0
    %207 = vmatprep.subr.mxu0 0.0
    %208 = vmatpush1.msra.mxu0 0.0
    %209 = vmatprep.subr.mxu0 0.0
    %210 = vmatpush1.msra.mxu0 0.0
    %211 = vmatprep.subr.mxu0 0.0
    %212 = vmatpush1.msra.mxu0 0.0
    %213 = vmatprep.subr.mxu0 0.0
    %214 = vmatpush1.msra.mxu0 0.0
    %215 = vmatprep.subr.mxu0 0.0
    %216 = vmatpush1.msra.mxu0 0.0
    %217 = vmatprep.subr.mxu0 0.0
    %218 = vmatpush1.msra.mxu0 0.0
    %219 = vmatprep.subr.mxu0 0.0
    %220 = vmatpush1.msra.mxu0 0.0
    %221 = vmatprep.subr.mxu0 0.0
    %222 = vmatpush1.msra.mxu0 0.0
    %223 = vmatprep.subr.mxu0 0.0
    %224 = vmatpush1.msra.mxu0 0.0
    %225 = vmatprep.subr.mxu0 0.0
    %226 = vmatpush1.msra.mxu0 0.0
    %227 = vmatprep.subr.mxu0 0.0
    %228 = vmatpush1.msra.mxu0 0.0
    %229 = vmatprep.subr.mxu0 0.0
    %230 = vmatpush1.msra.mxu0 0.0
    %231 = vmatprep.subr.mxu0 0.0
    %232 = vmatpush1.msra.mxu0 0.0
    %233 = vmatprep.subr.mxu0 0.0
    %234 = vmatpush1.msra.mxu0 0.0
    %235 = vmatprep.subr.mxu0 0.0
    %236 = vmatpush1.msra.mxu0 0.0
    %237 = vmatprep.subr.mxu0 0.0
    %238 = vmatpush1.msra.mxu0 0.0
    %239 = vmatprep.subr.mxu0 0.0
    %240 = vmatpush1.msra.mxu0 0.0
    %241 = vmatprep.mubr.f32.mxu0 0.0
    %242 = vmatmul.mubr.f32.gmra.mrb[0].mxu0 %v172
    %v243 = vpop.f32.mrb[0].mxu0
    %v244 = vadd.f32 0.0, %v243
    %v245 = vpop.f32.mrb[0].mxu0
    %246 = vmatprep.mubr.f32.mxu0 0.0
    %247 = vmatmul.mubr.f32.gmra.mrb[0].mxu0 %v175
    %v248 = vpop.f32.mrb[0].mxu0
    %v249 = vadd.f32 0.0, %v248
    %v250 = vpop.f32.mrb[0].mxu0
    %251 = vdwg.mxu0
    %v252 = vld [vmem:[%s3] sm:$0xff]
    %v253 = vld [vmem:[%s3 + $0x8] sm:$0xff]
    %v254 = vld [vmem:[%s3 + $0x10] sm:$0xff]
    %v255 = vld [vmem:[%s3 + $0x18] sm:$0xff]
    %vm256 = vcmask 261120
    %v258 = vsel %vm256, %v161, 0
    %260 = vmatprep.subr.mxu0 0.0
    %261 = vmatpush1.msra.mxu0 %v252
    %262 = vmatprep.subr.mxu0 0.0
    %263 = vmatpush1.msra.mxu0 %v253
    %264 = vmatprep.subr.mxu0 0.0
    %265 = vmatpush1.msra.mxu0 %v254
    %266 = vmatprep.subr.mxu0 0.0
    %267 = vmatpush1.msra.mxu0 %v255
    %268 = vmatprep.subr.mxu0 0.0
    %269 = vmatpush1.msra.mxu0 0.0
    %270 = vmatprep.subr.mxu0 0.0
    %271 = vmatpush1.msra.mxu0 0.0
    %272 = vmatprep.subr.mxu0 0.0
    %273 = vmatpush1.msra.mxu0 0.0
    %274 = vmatprep.subr.mxu0 0.0
    %275 = vmatpush1.msra.mxu0 0.0
    %276 = vmatprep.subr.mxu0 0.0
    %277 = vmatpush1.msra.mxu0 0.0
    %278 = vmatprep.subr.mxu0 0.0
    %279 = vmatpush1.msra.mxu0 0.0
    %280 = vmatprep.subr.mxu0 0.0
    %281 = vmatpush1.msra.mxu0 0.0
    %282 = vmatprep.subr.mxu0 0.0
    %283 = vmatpush1.msra.mxu0 0.0
    %284 = vmatprep.subr.mxu0 0.0
    %285 = vmatpush1.msra.mxu0 0.0
    %286 = vmatprep.subr.mxu0 0.0
    %287 = vmatpush1.msra.mxu0 0.0
    %288 = vmatprep.subr.mxu0 0.0
    %289 = vmatpush1.msra.mxu0 0.0
    %290 = vmatprep.subr.mxu0 0.0
    %291 = vmatpush1.msra.mxu0 0.0
    %292 = vmatprep.subr.mxu0 0.0
    %293 = vmatpush1.msra.mxu0 0.0
    %294 = vmatprep.subr.mxu0 0.0
    %295 = vmatpush1.msra.mxu0 0.0
    %296 = vmatprep.subr.mxu0 0.0
    %297 = vmatpush1.msra.mxu0 0.0
    %298 = vmatprep.subr.mxu0 0.0
    %299 = vmatpush1.msra.mxu0 0.0
    %300 = vmatprep.subr.mxu0 0.0
    %301 = vmatpush1.msra.mxu0 0.0
    %302 = vmatprep.subr.mxu0 0.0
    %303 = vmatpush1.msra.mxu0 0.0
    %304 = vmatprep.subr.mxu0 0.0
    %305 = vmatpush1.msra.mxu0 0.0
    %306 = vmatprep.subr.mxu0 0.0
    %307 = vmatpush1.msra.mxu0 0.0
    %308 = vmatprep.subr.mxu0 0.0
    %309 = vmatpush1.msra.mxu0 0.0
    %310 = vmatprep.subr.mxu0 0.0
    %311 = vmatpush1.msra.mxu0 0.0
    %312 = vmatprep.subr.mxu0 0.0
    %313 = vmatpush1.msra.mxu0 0.0
    %314 = vmatprep.subr.mxu0 0.0
    %315 = vmatpush1.msra.mxu0 0.0
    %316 = vmatprep.subr.mxu0 0.0
    %317 = vmatpush1.msra.mxu0 0.0
    %318 = vmatprep.subr.mxu0 0.0
    %319 = vmatpush1.msra.mxu0 0.0
    %320 = vmatprep.subr.mxu0 0.0
    %321 = vmatpush1.msra.mxu0 0.0
    %322 = vmatprep.subr.mxu0 0.0
    %323 = vmatpush1.msra.mxu0 0.0
    %324 = vmatprep.mubr.f32.mxu0 0.0
    %325 = vmatmul.mubr.f32.gmra.mrb[0].mxu0 %v258
    %v326 = vpop.f32.mrb[0].mxu0
    %v327 = vadd.f32 0.0, %v326
    %v328 = vpop.f32.mrb[0].mxu0
    %329 = vdwg.mxu0
    %v332 = vunpack.c.l.s4 1966171168
    %v333 = vunpack.c.0.s8 %v332
    %v334 = vlaneseq
    %v335 = vshrl.u32 %v334, 7
    %v336 = vsub.s32 %v333, %v335
    %v337 = vrot.slane %v327, %v336
    %v338 = vcombine.high %v337, %v337
    %v340 = vunpack.c.l.s4 1966171168
    %v341 = vunpack.c.0.s8 %v340
    %v342 = vlaneseq
    %v343 = vshrl.u32 %v342, 7
    %v344 = vsub.s32 %v341, %v343
    %v345 = vrot.slane %v337, %v344
    %v347 = vunpack.c.l.s4 1966171168
    %v348 = vunpack.c.0.s8 %v347
    %v349 = vlaneseq
    %v350 = vshrl.u32 %v349, 7
    %v351 = vsub.s32 %v348, %v350
    %v352 = vrot.slane %v338, %v351
    %v353 = vlaneseq
    %v354 = vshrl.u32 %v353, 7
    %v355 = vsub.s32 0, %v354
    %v356 = vrot.slane %v345, %v355
    %v357 = vlaneseq
    %v358 = vshrl.u32 %v357, 7
    %v359 = vsub.s32 0, %v358
    %v360 = vrot.slane %v352, %v359
    %v363 = vadd.f32 %v244, %v356
    %v364 = vadd.f32 %v249, %v360
    %v365 = vld [vmem:[%s5] sm:$0x1]
    %v367 = vlaneseq
    %v368 = vshrl.u32 %v367, 7
    %v369 = vsub.s32 0, %v368
    %v370 = vrot.slane %v365, %v369
    %v372 = vadd.f32 %v363, %v370
    %v373 = vadd.f32 %v364, %v370
    %v374 = vtanh.pop %v372
    %v375 = vtanh.pop %v373
    %v376 = vld [vmem:[#allocation8] sm:$0x1]
    %v378 = vlaneseq
    %v379 = vshrl.u32 %v378, 7
    %v380 = vsub.s32 0, %v379
    %v381 = vrot.slane %v376, %v380
    %v383 = vmul.f32 %v374, %v381
    %v384 = vmul.f32 %v375, %v381
    %v385 = vsel %vm256, %v383, 0.0
    %386 = vadd.xlane.f32.xlu0 %v385
    %v387 = vpop.xlane.xlu0 %386
    %v388 = vsel %vm256, %v384, 0.0
    %389 = vadd.xlane.f32.xlu0 %v388
    %v390 = vpop.xlane.xlu0 %389
    %v393 = vlaneseq
    %v394 = vand.u32 %v393, 127
    %v395 = vlaneseq
    %v396 = vshrl.u32 %v395, 7
    %v397 = vsub.s32 %v394, %v396
    %v398 = vrot.slane %v387, %v397
    %v399 = vlaneseq
    %v400 = vshrl.u32 %v399, 7
    %v401 = vsub.s32 %v394, %v400
    %v402 = vrot.slane %v390, %v401
    %vm403 = vcmask 1041409
    %v404 = vsel %vm403, %v402, %v398
    %vm406 = vcmask 58368
    %v407 = vsel %vm406, %v404, -inf
    %408 = vmax.xlane.f32.xlu0 %v407
    %v409 = vpop.xlane.xlu0 %408
    %v411 = vlaneseq
    %v412 = vshrl.u32 %v411, 7
    %v413 = vsub.s32 0, %v412
    %v414 = vrot.slane %v409, %v413
    %v415 = vlaneseq
    %v416 = vshrl.u32 %v415, 7
    %v417 = vsub.s32 1, %v416
    %v418 = vrot.slane %v409, %v417
    %v421 = vsub.f32 %v387, %v414
    %v422 = vsub.f32 %v390, %v418
    %v423 = vmul.f32 %v421, 1.442695
    %v424 = vpow.pop %v423
    %v425 = vmul.f32 %v422, 1.442695
    %v426 = vpow.pop %v425
    %429 = vset.pattern.permute.xlu0 0
    %430 = vperm.xlu0 %429, %v424
    %v431 = vpop.permute.xlu0 %430
    %432 = vset.pattern.permute.xlu0 0
    %433 = vperm.xlu0 %432, %v426
    %v434 = vpop.permute.xlu0 %433
    %v435 = vlaneseq
    %v436 = vshrl.u32 %v435, 7
    %v437 = vsub.s32 %v394, %v436
    %v438 = vrot.slane %v431, %v437
    %v439 = vlaneseq
    %v440 = vshrl.u32 %v439, 7
    %v441 = vsub.s32 %v394, %v440
    %v442 = vrot.slane %v434, %v441
    %v443 = vsel %vm403, %v442, %v438
    %v445 = vsel %vm406, %v443, 0.0
    %446 = vadd.xlane.f32.xlu0 %v445
    %v447 = vpop.xlane.xlu0 %446
    %v448 = vrcp.pop %v447
    %v450 = vlaneseq
    %v451 = vshrl.u32 %v450, 7
    %v452 = vsub.s32 0, %v451
    %v453 = vrot.slane %v448, %v452
    %v454 = vlaneseq
    %v455 = vshrl.u32 %v454, 7
    %v456 = vsub.s32 1, %v455
    %v457 = vrot.slane %v448, %v456
    %v460 = vmul.f32 %v424, %v453
    %v461 = vmul.f32 %v426, %v457
    %464 = vset.pattern.permute.xlu0 0
    %465 = vperm.xlu0 %464, %v460
    %v466 = vpop.permute.xlu0 %465
    %467 = vset.pattern.permute.xlu0 0
    %468 = vperm.xlu0 %467, %v461
    %v469 = vpop.permute.xlu0 %468
    %v470 = vlaneseq
    %v471 = vshrl.u32 %v470, 7
    %v472 = vsub.s32 %v394, %v471
    %v473 = vrot.slane %v466, %v472
    %v474 = vlaneseq
    %v475 = vshrl.u32 %v474, 7
    %v476 = vsub.s32 %v394, %v475
    %v477 = vrot.slane %v469, %v476
    %v478 = vsel %vm403, %v477, %v473
    %480 = vst.msk [vmem:[#allocation17] sm:$0x3] %vm406, %v478
    %v483 = vmul.f32 %v466, %v158
    %v484 = vmul.f32 %v469, %v159
    %v485 = vsel %vm170, %v483, 0.0
    %v486 = vrot.slane %v485, 4
    %v487 = vadd.f32 %v485, %v486
    %v488 = vrot.slane %v487, 2
    %v489 = vadd.f32 %v487, %v488
    %v490 = vrot.slane %v489, 1
    %v491 = vadd.f32 %v489, %v490
    %v492 = vsel %vm170, %v484, 0.0
    %v493 = vrot.slane %v492, 4
    %v494 = vadd.f32 %v492, %v493
    %v495 = vrot.slane %v494, 2
    %v496 = vadd.f32 %v494, %v495
    %v497 = vrot.slane %v496, 1
    %v498 = vadd.f32 %v496, %v497
    %v499 = vld [vmem:[#allocation5] sm:$0x3]
    %v500 = vld [vmem:[%s7] sm:$0xff]
    %v501 = vld [vmem:[%s7 + $0x8] sm:$0xff]
    %v502 = vld [vmem:[%s8] sm:$0xff]
    %v503 = vld [vmem:[%s8 + $0x8] sm:$0xff]
    %v504 = vld [vmem:[%s8 + $0x10] sm:$0xff]
    %v505 = vld [vmem:[%s8 + $0x18] sm:$0xff]
    %v506 = vld [vmem:[%s8 + $0x20] sm:$0xff]
    %v507 = vld [vmem:[%s8 + $0x28] sm:$0xff]
    %v508 = vld [vmem:[%s8 + $0x30] sm:$0xff]
    %v509 = vld [vmem:[%s8 + $0x38] sm:$0xff]
    %v512 = vsel %vm403, %v498, %v491
    %v513 = vsel %vm170, %v512, 0
    %515 = vmatprep.subr.mxu0 0.0
    %516 = vmatpush1.msra.mxu0 %v502
    %517 = vmatprep.subr.mxu0 0.0
    %518 = vmatpush1.msra.mxu0 %v503
    %519 = vmatprep.subr.mxu0 0.0
    %520 = vmatpush1.msra.mxu0 %v504
    %521 = vmatprep.subr.mxu0 0.0
    %522 = vmatpush1.msra.mxu0 %v505
    %523 = vmatprep.subr.mxu0 0.0
    %524 = vmatpush1.msra.mxu0 %v506
    %525 = vmatprep.subr.mxu0 0.0
    %526 = vmatpush1.msra.mxu0 %v507
    %527 = vmatprep.subr.mxu0 0.0
    %528 = vmatpush1.msra.mxu0 %v508
    %529 = vmatprep.subr.mxu0 0.0
    %530 = vmatpush1.msra.mxu0 %v509
    %531 = vmatprep.subr.mxu0 0.0
    %532 = vmatpush1.msra.mxu0 0.0
    %533 = vmatprep.subr.mxu0 0.0
    %534 = vmatpush1.msra.mxu0 0.0
    %535 = vmatprep.subr.mxu0 0.0
    %536 = vmatpush1.msra.mxu0 0.0
    %537 = vmatprep.subr.mxu0 0.0
    %538 = vmatpush1.msra.mxu0 0.0
    %539 = vmatprep.subr.mxu0 0.0
    %540 = vmatpush1.msra.mxu0 0.0
    %541 = vmatprep.subr.mxu0 0.0
    %542 = vmatpush1.msra.mxu0 0.0
    %543 = vmatprep.subr.mxu0 0.0
    %544 = vmatpush1.msra.mxu0 0.0
    %545 = vmatprep.subr.mxu0 0.0
    %546 = vmatpush1.msra.mxu0 0.0
    %547 = vmatprep.subr.mxu0 0.0
    %548 = vmatpush1.msra.mxu0 0.0
    %549 = vmatprep.subr.mxu0 0.0
    %550 = vmatpush1.msra.mxu0 0.0
    %551 = vmatprep.subr.mxu0 0.0
    %552 = vmatpush1.msra.mxu0 0.0
    %553 = vmatprep.subr.mxu0 0.0
    %554 = vmatpush1.msra.mxu0 0.0
    %555 = vmatprep.subr.mxu0 0.0
    %556 = vmatpush1.msra.mxu0 0.0
    %557 = vmatprep.subr.mxu0 0.0
    %558 = vmatpush1.msra.mxu0 0.0
    %559 = vmatprep.subr.mxu0 0.0
    %560 = vmatpush1.msra.mxu0 0.0
    %561 = vmatprep.subr.mxu0 0.0
    %562 = vmatpush1.msra.mxu0 0.0
    %563 = vmatprep.subr.mxu0 0.0
    %564 = vmatpush1.msra.mxu0 0.0
    %565 = vmatprep.subr.mxu0 0.0
    %566 = vmatpush1.msra.mxu0 0.0
    %567 = vmatprep.subr.mxu0 0.0
    %568 = vmatpush1.msra.mxu0 0.0
    %569 = vmatprep.subr.mxu0 0.0
    %570 = vmatpush1.msra.mxu0 0.0
    %571 = vmatprep.subr.mxu0 0.0
    %572 = vmatpush1.msra.mxu0 0.0
    %573 = vmatprep.subr.mxu0 0.0
    %574 = vmatpush1.msra.mxu0 0.0
    %575 = vmatprep.subr.mxu0 0.0
    %576 = vmatpush1.msra.mxu0 0.0
    %577 = vmatprep.subr.mxu0 0.0
    %578 = vmatpush1.msra.mxu0 0.0
    %579 = vmatprep.mubr.f32.mxu0 0.0
    %580 = vmatmul.mubr.f32.gmra.mrb[0].mxu0 %v513
    %v581 = vpop.f32.mrb[0].mxu0
    %v582 = vadd.f32 0.0, %v581
    %v583 = vpop.f32.mrb[0].mxu0
    %584 = vdwg.mxu0
    %vm585 = vcmask 130048
    %v587 = vsel %vm585, %v157, 0
    %589 = vmatprep.subr.mxu0 0.0
    %590 = vmatpush1.msra.mxu0 %v500
    %591 = vmatprep.subr.mxu0 0.0
    %592 = vmatpush1.msra.mxu0 %v501
    %593 = vmatprep.subr.mxu0 0.0
    %594 = vmatpush1.msra.mxu0 0.0
    %595 = vmatprep.subr.mxu0 0.0
    %596 = vmatpush1.msra.mxu0 0.0
    %597 = vmatprep.subr.mxu0 0.0
    %598 = vmatpush1.msra.mxu0 0.0
    %599 = vmatprep.subr.mxu0 0.0
    %600 = vmatpush1.msra.mxu0 0.0
    %601 = vmatprep.subr.mxu0 0.0
    %602 = vmatpush1.msra.mxu0 0.0
    %603 = vmatprep.subr.mxu0 0.0
    %604 = vmatpush1.msra.mxu0 0.0
    %605 = vmatprep.subr.mxu0 0.0
    %606 = vmatpush1.msra.mxu0 0.0
    %607 = vmatprep.subr.mxu0 0.0
    %608 = vmatpush1.msra.mxu0 0.0
    %609 = vmatprep.subr.mxu0 0.0
    %610 = vmatpush1.msra.mxu0 0.0
    %611 = vmatprep.subr.mxu0 0.0
    %612 = vmatpush1.msra.mxu0 0.0
    %613 = vmatprep.subr.mxu0 0.0
    %614 = vmatpush1.msra.mxu0 0.0
    %615 = vmatprep.subr.mxu0 0.0
    %616 = vmatpush1.msra.mxu0 0.0
    %617 = vmatprep.subr.mxu0 0.0
    %618 = vmatpush1.msra.mxu0 0.0
    %619 = vmatprep.subr.mxu0 0.0
    %620 = vmatpush1.msra.mxu0 0.0
    %621 = vmatprep.subr.mxu0 0.0
    %622 = vmatpush1.msra.mxu0 0.0
    %623 = vmatprep.subr.mxu0 0.0
    %624 = vmatpush1.msra.mxu0 0.0
    %625 = vmatprep.subr.mxu0 0.0
    %626 = vmatpush1.msra.mxu0 0.0
    %627 = vmatprep.subr.mxu0 0.0
    %628 = vmatpush1.msra.mxu0 0.0
    %629 = vmatprep.subr.mxu0 0.0
    %630 = vmatpush1.msra.mxu0 0.0
    %631 = vmatprep.subr.mxu0 0.0
    %632 = vmatpush1.msra.mxu0 0.0
    %633 = vmatprep.subr.mxu0 0.0
    %634 = vmatpush1.msra.mxu0 0.0
    %635 = vmatprep.subr.mxu0 0.0
    %636 = vmatpush1.msra.mxu0 0.0
    %637 = vmatprep.subr.mxu0 0.0
    %638 = vmatpush1.msra.mxu0 0.0
    %639 = vmatprep.subr.mxu0 0.0
    %640 = vmatpush1.msra.mxu0 0.0
    %641 = vmatprep.subr.mxu0 0.0
    %642 = vmatpush1.msra.mxu0 0.0
    %643 = vmatprep.subr.mxu0 0.0
    %644 = vmatpush1.msra.mxu0 0.0
    %645 = vmatprep.subr.mxu0 0.0
    %646 = vmatpush1.msra.mxu0 0.0
    %647 = vmatprep.subr.mxu0 0.0
    %648 = vmatpush1.msra.mxu0 0.0
    %649 = vmatprep.subr.mxu0 0.0
    %650 = vmatpush1.msra.mxu0 0.0
    %651 = vmatprep.subr.mxu0 0.0
    %652 = vmatpush1.msra.mxu0 0.0
    %653 = vmatprep.mubr.f32.mxu0 0.0
    %654 = vmatmul.mubr.f32.gmra.mrb[0].mxu0 %v587
    %v655 = vpop.f32.mrb[0].mxu0
    %v656 = vadd.f32 %v582, %v655
    %v657 = vpop.f32.mrb[0].mxu0
    %658 = vdwg.mxu0
    %v659 = vld [vmem:[#allocation10] sm:$0x1]
    %v661 = vlaneseq
    %v662 = vshrl.u32 %v661, 7
    %v663 = vsub.s32 0, %v662
    %v664 = vrot.slane %v659, %v663
    %v666 = vadd.f32 %v656, %v664
    %v667 = vld [vmem:[%s9] sm:$0xff]
    %v668 = vld [vmem:[%s9 + $0x8] sm:$0xff]
    %v669 = vld [vmem:[%s9 + $0x10] sm:$0xff]
    %v670 = vld [vmem:[%s9 + $0x18] sm:$0xff]
    %v671 = vld [vmem:[#allocation11] sm:$0x1]
    %v673 = vlaneseq
    %v674 = vshrl.u32 %v673, 7
    %v675 = vsub.s32 0, %v674
    %v676 = vrot.slane %v671, %v675
    %v679 = vsel %vm256, %v499, 0
    %681 = vmatprep.subr.mxu0 0.0
    %682 = vmatpush1.msra.mxu0 %v667
    %683 = vmatprep.subr.mxu0 0.0
    %684 = vmatpush1.msra.mxu0 %v668
    %685 = vmatprep.subr.mxu0 0.0
    %686 = vmatpush1.msra.mxu0 %v669
    %687 = vmatprep.subr.mxu0 0.0
    %688 = vmatpush1.msra.mxu0 %v670
    %689 = vmatprep.subr.mxu0 0.0
    %690 = vmatpush1.msra.mxu0 0.0
    %691 = vmatprep.subr.mxu0 0.0
    %692 = vmatpush1.msra.mxu0 0.0
    %693 = vmatprep.subr.mxu0 0.0
    %694 = vmatpush1.msra.mxu0 0.0
    %695 = vmatprep.subr.mxu0 0.0
    %696 = vmatpush1.msra.mxu0 0.0
    %697 = vmatprep.subr.mxu0 0.0
    %698 = vmatpush1.msra.mxu0 0.0
    %699 = vmatprep.subr.mxu0 0.0
    %700 = vmatpush1.msra.mxu0 0.0
    %701 = vmatprep.subr.mxu0 0.0
    %702 = vmatpush1.msra.mxu0 0.0
    %703 = vmatprep.subr.mxu0 0.0
    %704 = vmatpush1.msra.mxu0 0.0
    %705 = vmatprep.subr.mxu0 0.0
    %706 = vmatpush1.msra.mxu0 0.0
    %707 = vmatprep.subr.mxu0 0.0
    %708 = vmatpush1.msra.mxu0 0.0
    %709 = vmatprep.subr.mxu0 0.0
    %710 = vmatpush1.msra.mxu0 0.0
    %711 = vmatprep.subr.mxu0 0.0
    %712 = vmatpush1.msra.mxu0 0.0
    %713 = vmatprep.subr.mxu0 0.0
    %714 = vmatpush1.msra.mxu0 0.0
    %715 = vmatprep.subr.mxu0 0.0
    %716 = vmatpush1.msra.mxu0 0.0
    %717 = vmatprep.subr.mxu0 0.0
    %718 = vmatpush1.msra.mxu0 0.0
    %719 = vmatprep.subr.mxu0 0.0
    %720 = vmatpush1.msra.mxu0 0.0
    %721 = vmatprep.subr.mxu0 0.0
    %722 = vmatpush1.msra.mxu0 0.0
    %723 = vmatprep.subr.mxu0 0.0
    %724 = vmatpush1.msra.mxu0 0.0
    %725 = vmatprep.subr.mxu0 0.0
    %726 = vmatpush1.msra.mxu0 0.0
    %727 = vmatprep.subr.mxu0 0.0
    %728 = vmatpush1.msra.mxu0 0.0
    %729 = vmatprep.subr.mxu0 0.0
    %730 = vmatpush1.msra.mxu0 0.0
    %731 = vmatprep.subr.mxu0 0.0
    %732 = vmatpush1.msra.mxu0 0.0
    %733 = vmatprep.subr.mxu0 0.0
    %734 = vmatpush1.msra.mxu0 0.0
    %735 = vmatprep.subr.mxu0 0.0
    %736 = vmatpush1.msra.mxu0 0.0
    %737 = vmatprep.subr.mxu0 0.0
    %738 = vmatpush1.msra.mxu0 0.0
    %739 = vmatprep.subr.mxu0 0.0
    %740 = vmatpush1.msra.mxu0 0.0
    %741 = vmatprep.subr.mxu0 0.0
    %742 = vmatpush1.msra.mxu0 0.0
    %743 = vmatprep.subr.mxu0 0.0
    %744 = vmatpush1.msra.mxu0 0.0
    %745 = vmatprep.mubr.f32.mxu0 0.0
    %746 = vmatmul.mubr.f32.gmra.mrb[0].mxu0 %v679
    %v747 = vpop.f32.mrb[0].mxu0
    %v748 = vadd.f32 %v676, %v747
    %v749 = vpop.f32.mrb[0].mxu0
    %750 = vdwg.mxu0
    %v751 = vadd.f32 %v666, %v748
    %v752 = vxor.u32 %v751, 2147483648
    %v753 = vmul.f32 %v752, 1.442695
    %v754 = vpow.pop %v753
    %v755 = vadd.f32 %v754, 1.0
    %v756 = vrcp.pop %v755
    %v757 = vmul.f32 1.0, %v756
    %759 = vrot.lane.b32.xlu0 %v748, 64
    %v760 = vpop.permute.xlu0 %759
    %v762 = vmul.f32 %v757, %v760
    %764 = vrot.lane.b32.xlu0 %v762, 64
    %v765 = vpop.permute.xlu0 %764
    %v767 = vadd.f32 %v666, %v765
    %v768 = vtanh.pop %v767
    %v769 = vsub.f32 1.0, %v757
    %771 = vrot.lane.b32.xlu0 %v768, 96
    %v772 = vpop.permute.xlu0 %771
    %v774 = vmul.f32 %v769, %v772
    %775 = vrot.lane.b32.xlu0 %v499, 32
    %v776 = vpop.permute.xlu0 %775
    %v778 = vmul.f32 %v757, %v776
    %v779 = vadd.f32 %v774, %v778
    %781 = vrot.lane.b32.xlu0 %v779, 96
    %v782 = vpop.permute.xlu0 %781
    %vm784 = vcmask 254976
    %785 = vst.msk [vmem:[#allocation15] sm:$0x3] %vm784, %v782
    %v786 = vld [vmem:[%s160] sm:$0x3]
    %v787 = vld [vmem:[%s12] sm:$0xff]
    %v788 = vld [vmem:[%s12 + $0x8] sm:$0xff]
    %v789 = vld [vmem:[%s12 + $0x10] sm:$0xff]
    %v790 = vld [vmem:[%s12 + $0x18] sm:$0xff]
    %v791 = vld [vmem:[%s14] sm:$0x1]
    %v793 = vlaneseq
    %v794 = vshrl.u32 %v793, 7
    %v795 = vsub.s32 0, %v794
    %v796 = vrot.slane %v791, %v795
    %v798 = vsel %vm256, %v782, 0
    %800 = vmatprep.subr.mxu0 0.0
    %801 = vmatpush1.msra.mxu0 %v787
    %802 = vmatprep.subr.mxu0 0.0
    %803 = vmatpush1.msra.mxu0 %v788
    %804 = vmatprep.subr.mxu0 0.0
    %805 = vmatpush1.msra.mxu0 %v789
    %806 = vmatprep.subr.mxu0 0.0
    %807 = vmatpush1.msra.mxu0 %v790
    %808 = vmatprep.subr.mxu0 0.0
    %809 = vmatpush1.msra.mxu0 0.0
    %810 = vmatprep.subr.mxu0 0.0
    %811 = vmatpush1.msra.mxu0 0.0
    %812 = vmatprep.subr.mxu0 0.0
    %813 = vmatpush1.msra.mxu0 0.0
    %814 = vmatprep.subr.mxu0 0.0
    %815 = vmatpush1.msra.mxu0 0.0
    %816 = vmatprep.subr.mxu0 0.0
    %817 = vmatpush1.msra.mxu0 0.0
    %818 = vmatprep.subr.mxu0 0.0
    %819 = vmatpush1.msra.mxu0 0.0
    %820 = vmatprep.subr.mxu0 0.0
    %821 = vmatpush1.msra.mxu0 0.0
    %822 = vmatprep.subr.mxu0 0.0
    %823 = vmatpush1.msra.mxu0 0.0
    %824 = vmatprep.subr.mxu0 0.0
    %825 = vmatpush1.msra.mxu0 0.0
    %826 = vmatprep.subr.mxu0 0.0
    %827 = vmatpush1.msra.mxu0 0.0
    %828 = vmatprep.subr.mxu0 0.0
    %829 = vmatpush1.msra.mxu0 0.0
    %830 = vmatprep.subr.mxu0 0.0
    %831 = vmatpush1.msra.mxu0 0.0
    %832 = vmatprep.subr.mxu0 0.0
    %833 = vmatpush1.msra.mxu0 0.0
    %834 = vmatprep.subr.mxu0 0.0
    %835 = vmatpush1.msra.mxu0 0.0
    %836 = vmatprep.subr.mxu0 0.0
    %837 = vmatpush1.msra.mxu0 0.0
    %838 = vmatprep.subr.mxu0 0.0
    %839 = vmatpush1.msra.mxu0 0.0
    %840 = vmatprep.subr.mxu0 0.0
    %841 = vmatpush1.msra.mxu0 0.0
    %842 = vmatprep.subr.mxu0 0.0
    %843 = vmatpush1.msra.mxu0 0.0
    %844 = vmatprep.subr.mxu0 0.0
    %845 = vmatpush1.msra.mxu0 0.0
    %846 = vmatprep.subr.mxu0 0.0
    %847 = vmatpush1.msra.mxu0 0.0
    %848 = vmatprep.subr.mxu0 0.0
    %849 = vmatpush1.msra.mxu0 0.0
    %850 = vmatprep.subr.mxu0 0.0
    %851 = vmatpush1.msra.mxu0 0.0
    %852 = vmatprep.subr.mxu0 0.0
    %853 = vmatpush1.msra.mxu0 0.0
    %854 = vmatprep.subr.mxu0 0.0
    %855 = vmatpush1.msra.mxu0 0.0
    %856 = vmatprep.subr.mxu0 0.0
    %857 = vmatpush1.msra.mxu0 0.0
    %858 = vmatprep.subr.mxu0 0.0
    %859 = vmatpush1.msra.mxu0 0.0
    %860 = vmatprep.subr.mxu0 0.0
    %861 = vmatpush1.msra.mxu0 0.0
    %862 = vmatprep.subr.mxu0 0.0
    %863 = vmatpush1.msra.mxu0 0.0
    %864 = vmatprep.mubr.f32.mxu0 0.0
    %865 = vmatmul.mubr.f32.gmra.mrb[0].mxu0 %v798
    %v866 = vpop.f32.mrb[0].mxu0
    %v867 = vadd.f32 %v796, %v866
    %v868 = vpop.f32.mrb[0].mxu0
    %869 = vdwg.mxu0
    %v870 = vld [vmem:[%s13] sm:$0xff]
    %v871 = vld [vmem:[%s13 + $0x8] sm:$0xff]
    %v872 = vld [vmem:[%s13 + $0x10] sm:$0xff]
    %v873 = vld [vmem:[%s13 + $0x18] sm:$0xff]
    %v874 = vld [vmem:[%s15] sm:$0x1]
    %v876 = vlaneseq
    %v877 = vshrl.u32 %v876, 7
    %v878 = vsub.s32 0, %v877
    %v879 = vrot.slane %v874, %v878
    %v882 = vsel %vm256, %v786, 0
    %884 = vmatprep.subr.mxu0 0.0
    %885 = vmatpush1.msra.mxu0 %v870
    %886 = vmatprep.subr.mxu0 0.0
    %887 = vmatpush1.msra.mxu0 %v871
    %888 = vmatprep.subr.mxu0 0.0
    %889 = vmatpush1.msra.mxu0 %v872
    %890 = vmatprep.subr.mxu0 0.0
    %891 = vmatpush1.msra.mxu0 %v873
    %892 = vmatprep.subr.mxu0 0.0
    %893 = vmatpush1.msra.mxu0 0.0
    %894 = vmatprep.subr.mxu0 0.0
    %895 = vmatpush1.msra.mxu0 0.0
    %896 = vmatprep.subr.mxu0 0.0
    %897 = vmatpush1.msra.mxu0 0.0
    %898 = vmatprep.subr.mxu0 0.0
    %899 = vmatpush1.msra.mxu0 0.0
    %900 = vmatprep.subr.mxu0 0.0
    %901 = vmatpush1.msra.mxu0 0.0
    %902 = vmatprep.subr.mxu0 0.0
    %903 = vmatpush1.msra.mxu0 0.0
    %904 = vmatprep.subr.mxu0 0.0
    %905 = vmatpush1.msra.mxu0 0.0
    %906 = vmatprep.subr.mxu0 0.0
    %907 = vmatpush1.msra.mxu0 0.0
    %908 = vmatprep.subr.mxu0 0.0
    %909 = vmatpush1.msra.mxu0 0.0
    %910 = vmatprep.subr.mxu0 0.0
    %911 = vmatpush1.msra.mxu0 0.0
    %912 = vmatprep.subr.mxu0 0.0
    %913 = vmatpush1.msra.mxu0 0.0
    %914 = vmatprep.subr.mxu0 0.0
    %915 = vmatpush1.msra.mxu0 0.0
    %916 = vmatprep.subr.mxu0 0.0
    %917 = vmatpush1.msra.mxu0 0.0
    %918 = vmatprep.subr.mxu0 0.0
    %919 = vmatpush1.msra.mxu0 0.0
    %920 = vmatprep.subr.mxu0 0.0
    %921 = vmatpush1.msra.mxu0 0.0
    %922 = vmatprep.subr.mxu0 0.0
    %923 = vmatpush1.msra.mxu0 0.0
    %924 = vmatprep.subr.mxu0 0.0
    %925 = vmatpush1.msra.mxu0 0.0
    %926 = vmatprep.subr.mxu0 0.0
    %927 = vmatpush1.msra.mxu0 0.0
    %928 = vmatprep.subr.mxu0 0.0
    %929 = vmatpush1.msra.mxu0 0.0
    %930 = vmatprep.subr.mxu0 0.0
    %931 = vmatpush1.msra.mxu0 0.0
    %932 = vmatprep.subr.mxu0 0.0
    %933 = vmatpush1.msra.mxu0 0.0
    %934 = vmatprep.subr.mxu0 0.0
    %935 = vmatpush1.msra.mxu0 0.0
    %936 = vmatprep.subr.mxu0 0.0
    %937 = vmatpush1.msra.mxu0 0.0
    %938 = vmatprep.subr.mxu0 0.0
    %939 = vmatpush1.msra.mxu0 0.0
    %940 = vmatprep.subr.mxu0 0.0
    %941 = vmatpush1.msra.mxu0 0.0
    %942 = vmatprep.subr.mxu0 0.0
    %943 = vmatpush1.msra.mxu0 0.0
    %944 = vmatprep.subr.mxu0 0.0
    %945 = vmatpush1.msra.mxu0 0.0
    %946 = vmatprep.subr.mxu0 0.0
    %947 = vmatpush1.msra.mxu0 0.0
    %948 = vmatprep.mubr.f32.mxu0 0.0
    %949 = vmatmul.mubr.f32.gmra.mrb[0].mxu0 %v882
    %v950 = vpop.f32.mrb[0].mxu0
    %v951 = vadd.f32 %v879, %v950
    %v952 = vpop.f32.mrb[0].mxu0
    %953 = vdwg.mxu0
    %v954 = vadd.f32 %v867, %v951
    %v955 = vxor.u32 %v954, 2147483648
    %v956 = vmul.f32 %v955, 1.442695
    %v957 = vpow.pop %v956
    %v958 = vadd.f32 %v957, 1.0
    %v959 = vrcp.pop %v958
    %v960 = vmul.f32 1.0, %v959
    %962 = vrot.lane.b32.xlu0 %v951, 64
    %v963 = vpop.permute.xlu0 %962
    %v965 = vmul.f32 %v960, %v963
    %967 = vrot.lane.b32.xlu0 %v965, 64
    %v968 = vpop.permute.xlu0 %967
    %v970 = vadd.f32 %v867, %v968
    %v971 = vtanh.pop %v970
    %v972 = vsub.f32 1.0, %v960
    %974 = vrot.lane.b32.xlu0 %v971, 96
    %v975 = vpop.permute.xlu0 %974
    %v977 = vmul.f32 %v972, %v975
    %978 = vrot.lane.b32.xlu0 %v786, 32
    %v979 = vpop.permute.xlu0 %978
    %v981 = vmul.f32 %v960, %v979
    %v982 = vadd.f32 %v977, %v981
    %984 = vrot.lane.b32.xlu0 %v982, 96
    %v985 = vpop.permute.xlu0 %984
    %s987 = scalar_lea.vmem [#allocation15], 2
    %988 = vst.msk [vmem:[%s987] sm:$0x3] %vm784, %v985
    %v989 = vld [vmem:[#allocation13] sm:$0xff]
    %v990 = vld [vmem:[#allocation13 + $0x8] sm:$0xff]
    %v991 = vld [vmem:[%s17] sm:$0xff]
    %v992 = vld [vmem:[%s17 + $0x8] sm:$0xff]
    %v993 = vld [vmem:[%s17 + $0x10] sm:$0xff]
    %v994 = vld [vmem:[%s17 + $0x18] sm:$0xff]
    %v995 = vld [vmem:[%s17 + $0x20] sm:$0xff]
    %v996 = vld [vmem:[%s17 + $0x28] sm:$0xff]
    %v997 = vld [vmem:[%s17 + $0x30] sm:$0xff]
    %v998 = vld [vmem:[%s17 + $0x38] sm:$0xff]
    %999 = vmatprep.subr.mxu0 0.0
    %1000 = vmatpush1.msra.mxu0 %v991
    %1001 = vmatprep.subr.mxu0 0.0
    %1002 = vmatpush1.msra.mxu0 %v992
    %1003 = vmatprep.subr.mxu0 0.0
    %1004 = vmatpush1.msra.mxu0 %v993
    %1005 = vmatprep.subr.mxu0 0.0
    %1006 = vmatpush1.msra.mxu0 %v994
    %1007 = vmatprep.subr.mxu0 0.0
    %1008 = vmatpush1.msra.mxu0 %v995
    %1009 = vmatprep.subr.mxu0 0.0
    %1010 = vmatpush1.msra.mxu0 %v996
    %1011 = vmatprep.subr.mxu0 0.0
    %1012 = vmatpush1.msra.mxu0 %v997
    %1013 = vmatprep.subr.mxu0 0.0
    %1014 = vmatpush1.msra.mxu0 %v998
    %1015 = vmatprep.subr.mxu0 0.0
    %1016 = vmatpush1.msra.mxu0 0.0
    %1017 = vmatprep.subr.mxu0 0.0
    %1018 = vmatpush1.msra.mxu0 0.0
    %1019 = vmatprep.subr.mxu0 0.0
    %1020 = vmatpush1.msra.mxu0 0.0
    %1021 = vmatprep.subr.mxu0 0.0
    %1022 = vmatpush1.msra.mxu0 0.0
    %1023 = vmatprep.subr.mxu0 0.0
    %1024 = vmatpush1.msra.mxu0 0.0
    %1025 = vmatprep.subr.mxu0 0.0
    %1026 = vmatpush1.msra.mxu0 0.0
    %1027 = vmatprep.subr.mxu0 0.0
    %1028 = vmatpush1.msra.mxu0 0.0
    %1029 = vmatprep.subr.mxu0 0.0
    %1030 = vmatpush1.msra.mxu0 0.0
    %1031 = vmatprep.subr.mxu0 0.0
    %1032 = vmatpush1.msra.mxu0 0.0
    %1033 = vmatprep.subr.mxu0 0.0
    %1034 = vmatpush1.msra.mxu0 0.0
    %1035 = vmatprep.subr.mxu0 0.0
    %1036 = vmatpush1.msra.mxu0 0.0
    %1037 = vmatprep.subr.mxu0 0.0
    %1038 = vmatpush1.msra.mxu0 0.0
    %1039 = vmatprep.subr.mxu0 0.0
    %1040 = vmatpush1.msra.mxu0 0.0
    %1041 = vmatprep.subr.mxu0 0.0
    %1042 = vmatpush1.msra.mxu0 0.0
    %1043 = vmatprep.subr.mxu0 0.0
    %1044 = vmatpush1.msra.mxu0 0.0
    %1045 = vmatprep.subr.mxu0 0.0
    %1046 = vmatpush1.msra.mxu0 0.0
    %1047 = vmatprep.subr.mxu0 0.0
    %1048 = vmatpush1.msra.mxu0 0.0
    %1049 = vmatprep.subr.mxu0 0.0
    %1050 = vmatpush1.msra.mxu0 0.0
    %1051 = vmatprep.subr.mxu0 0.0
    %1052 = vmatpush1.msra.mxu0 0.0
    %1053 = vmatprep.subr.mxu0 0.0
    %1054 = vmatpush1.msra.mxu0 0.0
    %1055 = vmatprep.subr.mxu0 0.0
    %1056 = vmatpush1.msra.mxu0 0.0
    %1057 = vmatprep.subr.mxu0 0.0
    %1058 = vmatpush1.msra.mxu0 0.0
    %1059 = vmatprep.subr.mxu0 0.0
    %1060 = vmatpush1.msra.mxu0 0.0
    %1061 = vmatprep.subr.mxu0 0.0
    %1062 = vmatpush1.msra.mxu0 0.0
    %1063 = vmatprep.mubr.f32.mxu0 0.0
    %1064 = vmatmul.mubr.f32.gmra.mrb[0].mxu0 %v513
    %v1065 = vpop.f32.mrb[0].mxu0
    %v1066 = vadd.f32 0.0, %v1065
    %v1067 = vpop.f32.mrb[0].mxu0
    %1068 = vdwg.mxu0
    %1069 = vmatprep.subr.mxu0 0.0
    %1070 = vmatpush1.msra.mxu0 %v989
    %1071 = vmatprep.subr.mxu0 0.0
    %1072 = vmatpush1.msra.mxu0 %v990
    %1073 = vmatprep.subr.mxu0 0.0
    %1074 = vmatpush1.msra.mxu0 0.0
    %1075 = vmatprep.subr.mxu0 0.0
    %1076 = vmatpush1.msra.mxu0 0.0
    %1077 = vmatprep.subr.mxu0 0.0
    %1078 = vmatpush1.msra.mxu0 0.0
    %1079 = vmatprep.subr.mxu0 0.0
    %1080 = vmatpush1.msra.mxu0 0.0
    %1081 = vmatprep.subr.mxu0 0.0
    %1082 = vmatpush1.msra.mxu0 0.0
    %1083 = vmatprep.subr.mxu0 0.0
    %1084 = vmatpush1.msra.mxu0 0.0
    %1085 = vmatprep.subr.mxu0 0.0
    %1086 = vmatpush1.msra.mxu0 0.0
    %1087 = vmatprep.subr.mxu0 0.0
    %1088 = vmatpush1.msra.mxu0 0.0
    %1089 = vmatprep.subr.mxu0 0.0
    %1090 = vmatpush1.msra.mxu0 0.0
    %1091 = vmatprep.subr.mxu0 0.0
    %1092 = vmatpush1.msra.mxu0 0.0
    %1093 = vmatprep.subr.mxu0 0.0
    %1094 = vmatpush1.msra.mxu0 0.0
    %1095 = vmatprep.subr.mxu0 0.0
    %1096 = vmatpush1.msra.mxu0 0.0
    %1097 = vmatprep.subr.mxu0 0.0
    %1098 = vmatpush1.msra.mxu0 0.0
    %1099 = vmatprep.subr.mxu0 0.0
    %1100 = vmatpush1.msra.mxu0 0.0
    %1101 = vmatprep.subr.mxu0 0.0
    %1102 = vmatpush1.msra.mxu0 0.0
    %1103 = vmatprep.subr.mxu0 0.0
    %1104 = vmatpush1.msra.mxu0 0.0
    %1105 = vmatprep.subr.mxu0 0.0
    %1106 = vmatpush1.msra.mxu0 0.0
    %1107 = vmatprep.subr.mxu0 0.0
    %1108 = vmatpush1.msra.mxu0 0.0
    %1109 = vmatprep.subr.mxu0 0.0
    %1110 = vmatpush1.msra.mxu0 0.0
    %1111 = vmatprep.subr.mxu0 0.0
    %1112 = vmatpush1.msra.mxu0 0.0
    %1113 = vmatprep.subr.mxu0 0.0
    %1114 = vmatpush1.msra.mxu0 0.0
    %1115 = vmatprep.subr.mxu0 0.0
    %1116 = vmatpush1.msra.mxu0 0.0
    %1117 = vmatprep.subr.mxu0 0.0
    %1118 = vmatpush1.msra.mxu0 0.0
    %1119 = vmatprep.subr.mxu0 0.0
    %1120 = vmatpush1.msra.mxu0 0.0
    %1121 = vmatprep.subr.mxu0 0.0
    %1122 = vmatpush1.msra.mxu0 0.0
    %1123 = vmatprep.subr.mxu0 0.0
    %1124 = vmatpush1.msra.mxu0 0.0
    %1125 = vmatprep.subr.mxu0 0.0
    %1126 = vmatpush1.msra.mxu0 0.0
    %1127 = vmatprep.subr.mxu0 0.0
    %1128 = vmatpush1.msra.mxu0 0.0
    %1129 = vmatprep.subr.mxu0 0.0
    %1130 = vmatpush1.msra.mxu0 0.0
    %1131 = vmatprep.subr.mxu0 0.0
    %1132 = vmatpush1.msra.mxu0 0.0
    %1133 = vmatprep.mubr.f32.mxu0 0.0
    %1134 = vmatmul.mubr.f32.gmra.mrb[0].mxu0 %v587
    %v1135 = vpop.f32.mrb[0].mxu0
    %v1136 = vadd.f32 %v1066, %v1135
    %v1137 = vpop.f32.mrb[0].mxu0
    %1138 = vdwg.mxu0
    %v1139 = vld [vmem:[%s18] sm:$0xff]
    %v1140 = vld [vmem:[%s18 + $0x8] sm:$0xff]
    %v1141 = vld [vmem:[%s18 + $0x10] sm:$0xff]
    %v1142 = vld [vmem:[%s18 + $0x18] sm:$0xff]
    %v1143 = vsel %vm256, %v985, 0
    %1145 = vmatprep.subr.mxu0 0.0
    %1146 = vmatpush1.msra.mxu0 %v1139
    %1147 = vmatprep.subr.mxu0 0.0
    %1148 = vmatpush1.msra.mxu0 %v1140
    %1149 = vmatprep.subr.mxu0 0.0
    %1150 = vmatpush1.msra.mxu0 %v1141
    %1151 = vmatprep.subr.mxu0 0.0
    %1152 = vmatpush1.msra.mxu0 %v1142
    %1153 = vmatprep.subr.mxu0 0.0
    %1154 = vmatpush1.msra.mxu0 0.0
    %1155 = vmatprep.subr.mxu0 0.0
    %1156 = vmatpush1.msra.mxu0 0.0
    %1157 = vmatprep.subr.mxu0 0.0
    %1158 = vmatpush1.msra.mxu0 0.0
    %1159 = vmatprep.subr.mxu0 0.0
    %1160 = vmatpush1.msra.mxu0 0.0
    %1161 = vmatprep.subr.mxu0 0.0
    %1162 = vmatpush1.msra.mxu0 0.0
    %1163 = vmatprep.subr.mxu0 0.0
    %1164 = vmatpush1.msra.mxu0 0.0
    %1165 = vmatprep.subr.mxu0 0.0
    %1166 = vmatpush1.msra.mxu0 0.0
    %1167 = vmatprep.subr.mxu0 0.0
    %1168 = vmatpush1.msra.mxu0 0.0
    %1169 = vmatprep.subr.mxu0 0.0
    %1170 = vmatpush1.msra.mxu0 0.0
    %1171 = vmatprep.subr.mxu0 0.0
    %1172 = vmatpush1.msra.mxu0 0.0
    %1173 = vmatprep.subr.mxu0 0.0
    %1174 = vmatpush1.msra.mxu0 0.0
    %1175 = vmatprep.subr.mxu0 0.0
    %1176 = vmatpush1.msra.mxu0 0.0
    %1177 = vmatprep.subr.mxu0 0.0
    %1178 = vmatpush1.msra.mxu0 0.0
    %1179 = vmatprep.subr.mxu0 0.0
    %1180 = vmatpush1.msra.mxu0 0.0
    %1181 = vmatprep.subr.mxu0 0.0
    %1182 = vmatpush1.msra.mxu0 0.0
    %1183 = vmatprep.subr.mxu0 0.0
    %1184 = vmatpush1.msra.mxu0 0.0
    %1185 = vmatprep.subr.mxu0 0.0
    %1186 = vmatpush1.msra.mxu0 0.0
    %1187 = vmatprep.subr.mxu0 0.0
    %1188 = vmatpush1.msra.mxu0 0.0
    %1189 = vmatprep.subr.mxu0 0.0
    %1190 = vmatpush1.msra.mxu0 0.0
    %1191 = vmatprep.subr.mxu0 0.0
    %1192 = vmatpush1.msra.mxu0 0.0
    %1193 = vmatprep.subr.mxu0 0.0
    %1194 = vmatpush1.msra.mxu0 0.0
    %1195 = vmatprep.subr.mxu0 0.0
    %1196 = vmatpush1.msra.mxu0 0.0
    %1197 = vmatprep.subr.mxu0 0.0
    %1198 = vmatpush1.msra.mxu0 0.0
    %1199 = vmatprep.subr.mxu0 0.0
    %1200 = vmatpush1.msra.mxu0 0.0
    %1201 = vmatprep.subr.mxu0 0.0
    %1202 = vmatpush1.msra.mxu0 0.0
    %1203 = vmatprep.subr.mxu0 0.0
    %1204 = vmatpush1.msra.mxu0 0.0
    %1205 = vmatprep.subr.mxu0 0.0
    %1206 = vmatpush1.msra.mxu0 0.0
    %1207 = vmatprep.subr.mxu0 0.0
    %1208 = vmatpush1.msra.mxu0 0.0
    %1209 = vmatprep.mubr.f32.mxu0 0.0
    %1210 = vmatmul.mubr.f32.gmra.mrb[0].mxu0 %v1143
    %v1211 = vpop.f32.mrb[0].mxu0
    %v1212 = vadd.f32 0.0, %v1211
    %v1213 = vpop.f32.mrb[0].mxu0
    %1214 = vdwg.mxu0
    %v1215 = vadd.f32 %v1136, %v1212
    %v1216 = vld [vmem:[%s19] sm:$0x1]
    %v1218 = vlaneseq
    %v1219 = vshrl.u32 %v1218, 7
    %v1220 = vsub.s32 0, %v1219
    %v1221 = vrot.slane %v1216, %v1220
    %v1223 = vadd.f32 %v1215, %v1221
    %vm1224 = vcmask 189440
    %1225 = vst.msk [vmem:[#allocation14] sm:$0x3] %vm1224, %v1223
    // Predicated region
    $region110: #{tpu_custom_call.1} parent=1 // pred_check
      _
    $region111: #{tpu_custom_call.1} parent=1 // pred_check_branch
      %1227 = sbr.rel (0) target = $region113
    $region112: #{tpu_custom_call.1} parent=1 // pred_region
      %s1229 = ssub.s32 32, 32
      %1230 = vsyncadd [#allocation4], %s1229
      %s1232 = sshll.u32 [#allocation14], 4
      %s1233 = int_to_ptr.vmem [resolvable:$true] %s1232
      %1235 = dma.vmem_to_hbm [thread:$0]  %s1233, 32, %s20, [#allocation4]
    $region113: #{tpu_custom_call.1} parent=1 // pred_fallthru
      _
    // Predicated region
    $region114: #{tpu_custom_call.1} parent=1 // pred_check
      _
    $region115: #{tpu_custom_call.1} parent=1 // pred_check_branch
      %1237 = sbr.rel (0) target = $region117
    $region116: #{tpu_custom_call.1} parent=1 // pred_region
      %s1239 = ssub.s32 64, 64
      %1240 = vsyncadd [#allocation16], %s1239
      %s1241 = sshll.u32 [#allocation15], 4
      %s1242 = int_to_ptr.vmem [resolvable:$true] %s1241
      %1247 = dma.vmem_to_hbm [thread:$0]  %s1242, 64, %s21, [#allocation16], 32, 32, 2
    $region117: #{tpu_custom_call.1} parent=1 // pred_fallthru
      _
    // Predicated region
    $region118: #{tpu_custom_call.1} parent=1 // pred_check
      _
    $region119: #{tpu_custom_call.1} parent=1 // pred_check_branch
      %1249 = sbr.rel (0) target = $region121
    $region120: #{tpu_custom_call.1} parent=1 // pred_region
      %s1251 = ssub.s32 32, 32
      %1252 = vsyncadd [#allocation16], %s1251
      %s1254 = sshll.u32 [#allocation17], 4
      %s1255 = int_to_ptr.vmem [resolvable:$true] %s1254
      %1257 = dma.vmem_to_hbm [thread:$0]  %s1255, 32, %s22, [#allocation16]
    $region121: #{tpu_custom_call.1} parent=1 // pred_fallthru
      _
    // Predicated region
    $region122: #{tpu_custom_call.1} parent=1 // pred_check
      _
    $region123: #{tpu_custom_call.1} parent=1 // pred_check_branch
      %1259 = sbr.rel (0) target = $region125
    $region124: #{tpu_custom_call.1} parent=1 // pred_region
      %1260 = dma.done [#allocation4], 32
    $region125: #{tpu_custom_call.1} parent=1 // pred_fallthru
      _
    // Predicated region
    $region126: #{tpu_custom_call.1} parent=1 // pred_check
      _
    $region127: #{tpu_custom_call.1} parent=1 // pred_check_branch
      %1262 = sbr.rel (0) target = $region129
    $region128: #{tpu_custom_call.1} parent=1 // pred_region
      %1263 = dma.done [#allocation16], 64
    $region129: #{tpu_custom_call.1} parent=1 // pred_fallthru
      _
    // Predicated region
    $region130: #{tpu_custom_call.1} parent=1 // pred_check
      _
    $region131: #{tpu_custom_call.1} parent=1 // pred_check_branch
      %1265 = sbr.rel (0) target = $region133
    $region132: #{tpu_custom_call.1} parent=1 // pred_region
      %1266 = dma.done [#allocation16], 32
    $region133: #{tpu_custom_call.1} parent=1 // pred_fallthru
      _
    %1267 = vsyncpa [#allocation3], 1
    %1268 = vsyncpa [#allocation6], 1
    %1269 = vsyncpa [#allocation9], 1
    %1270 = vsyncpa [#allocation12], 1
    %1271 = vsyncpa [#allocation4], 1
    %1272 = vsyncpa [#allocation16], 1

</llo_original>
